<compile_context>
chip_gen: v7x
topology: tpu7x:2x2x1
jax: 0.10.0
libtpu: 0.0.40
codegen_flags: <defaults>
</compile_context>

<pallas_src>
import functools

import jax
import jax.numpy as jnp
from jax.experimental import pallas as pl
from jax.experimental.pallas import tpu as pltpu


def _round_up(x, m):
    return ((x + m - 1) // m) * m


# ----------------------------- Pallas kernel -------------------------------

def gconv_fused_kernel(a_hbm_ref, x_ref, p_ref, mask_ref,
                       w1_ref, b1_ref, w2_ref, b2_ref, gamma_ref, beta_ref,
                       z_out_ref, g_out_ref,
                       z_scr, zb_scr, a_vmem, a_sem, *, inv_n):
    """One grid step == one GIN layer + its global_add_pool epilogue.

    a_hbm_ref: [Np, Np]  bf16 dense adjacency (dst, src), left in HBM
    x_ref:     [Np, Fp]  f32 padded input features
    p_ref:     [Gp, Np]  bf16 pooling matrix
    mask_ref:  [Np, 1]   f32, 1.0 for real nodes, 0.0 for padding rows
    w1/w2_ref: [Fp, Fp]  bf16 layer slice, already transposed to [in, out]
    b1/b2/gamma/beta_ref: [1, Fp] f32
    z_out_ref: [Np, Fp]  bf16 lane-slab slice for this layer
    g_out_ref: [Gp, Fp]  bf16 lane-slab slice for this layer
    z_scr:     [Np, Fp]  f32 carry of z across layers (BN math)
    zb_scr:    [Np, Fp]  bf16 carry of z (MXU operand, cast once per layer)
    a_vmem:    [Np, Np]  bf16 single-buffered copy of the adjacency
    """
    @pl.when(pl.program_id(0) == 0)
    def _():
        # One-time DMA of the grid-invariant adjacency (no double-buffering of
        # the largest input).
        cp = pltpu.make_async_copy(a_hbm_ref, a_vmem, a_sem)
        cp.start()
        cp.wait()
        z_scr[...] = x_ref[...]
        zb_scr[...] = x_ref[...].astype(jnp.bfloat16)

    z = z_scr[...]            # f32
    zb = zb_scr[...]          # bf16

    # GIN aggregation, eps = 0:  h_i = z_i + sum_{j in N(i)} z_j  ==  A @ z + z
    h = jnp.dot(a_vmem[...], zb, preferred_element_type=jnp.float32) + z

    # MLP: Linear -> ReLU -> Linear, then the outer F.relu.
    h = jnp.dot(h.astype(jnp.bfloat16), w1_ref[...],
                preferred_element_type=jnp.float32) + b1_ref[...]
    h = jnp.maximum(h, 0.0)
    h = jnp.dot(h.astype(jnp.bfloat16), w2_ref[...],
                preferred_element_type=jnp.float32) + b2_ref[...]
    h = jnp.maximum(h, 0.0)

    # BatchNorm1d, training mode (batch stats, biased variance, eps = 1e-5).
    # Single pass (sum & sum-of-squares), masked to the valid node rows, with
    # normalize + affine folded into one FMA.
    m = mask_ref[...]                                    # [Np, 1]
    hm = h * m
    mean = jnp.sum(hm, axis=0, keepdims=True) * inv_n    # [1, Fp]
    ex2 = jnp.sum(hm * h, axis=0, keepdims=True) * inv_n
    var = jnp.maximum(ex2 - mean * mean, 0.0)
    scale = gamma_ref[...] * jax.lax.rsqrt(var + 1e-5)   # [1, Fp]
    shift = beta_ref[...] - mean * scale                 # [1, Fp]
    z_new = (h * scale + shift) * m                      # padded rows/lanes -> 0

    zb_new = z_new.astype(jnp.bfloat16)                  # single cast per layer
    z_scr[...] = z_new
    zb_scr[...] = zb_new

    # Lane-concatenated bf16 per-layer outputs.
    z_out_ref[...] = zb_new
    # global_add_pool epilogue: g[g] = sum_{n: batch[n]==g} z[n] == P @ z
    g_out_ref[...] = jnp.dot(p_ref[...], zb_new,
                             preferred_element_type=jnp.float32
                             ).astype(jnp.bfloat16)


# ------------------------------ JAX wrappers --------------------------------

def make_params(key, input_dim, hidden_dim, num_layers):
    """PyTorch-convention parameters (Linear weights are [out, in])."""
    params = []
    for i in range(num_layers):
        in_dim = input_dim if i == 0 else hidden_dim
        key, k1, k2, k3, k4 = jax.random.split(key, 5)
        bound1 = 1.0 / (in_dim ** 0.5)
        bound2 = 1.0 / (hidden_dim ** 0.5)
        params.append(dict(
            w1=jax.random.uniform(k1, (hidden_dim, in_dim), jnp.float32,
                                  -bound1, bound1),
            b1=jax.random.uniform(k2, (hidden_dim,), jnp.float32,
                                  -bound1, bound1),
            w2=jax.random.uniform(k3, (hidden_dim, hidden_dim), jnp.float32,
                                  -bound2, bound2),
            b2=jax.random.uniform(k4, (hidden_dim,), jnp.float32,
                                  -bound2, bound2),
            gamma=jnp.ones((hidden_dim,), jnp.float32),   # BatchNorm1d weight
            beta=jnp.zeros((hidden_dim,), jnp.float32),   # BatchNorm1d bias
        ))
    return params


def pack_params(params, input_dim, hidden_dim):
    """Pad to a 128-multiple lane width, transpose to [in, out], stack over L."""
    f_pad = _round_up(max(input_dim, hidden_dim), 128)
    w1s, b1s, w2s, b2s, gms, bts = [], [], [], [], [], []
    for i, layer in enumerate(params):
        in_dim = input_dim if i == 0 else hidden_dim
        w1 = jnp.zeros((f_pad, f_pad), jnp.float32)
        w1 = w1.at[:in_dim, :hidden_dim].set(layer["w1"].T)
        w2 = jnp.zeros((f_pad, f_pad), jnp.float32)
        w2 = w2.at[:hidden_dim, :hidden_dim].set(layer["w2"].T)
        b1 = jnp.zeros((1, f_pad), jnp.float32).at[0, :hidden_dim].set(layer["b1"])
        b2 = jnp.zeros((1, f_pad), jnp.float32).at[0, :hidden_dim].set(layer["b2"])
        gm = jnp.zeros((1, f_pad), jnp.float32).at[0, :hidden_dim].set(layer["gamma"])
        bt = jnp.zeros((1, f_pad), jnp.float32).at[0, :hidden_dim].set(layer["beta"])
        w1s.append(w1); w2s.append(w2); b1s.append(b1); b2s.append(b2)
        gms.append(gm); bts.append(bt)
    return dict(
        w1=jnp.stack(w1s).astype(jnp.bfloat16),   # [L, Fp, Fp]
        b1=jnp.stack(b1s),                        # [L, 1, Fp]
        w2=jnp.stack(w2s).astype(jnp.bfloat16),   # [L, Fp, Fp]
        b2=jnp.stack(b2s),                        # [L, 1, Fp]
        gamma=jnp.stack(gms),                     # [L, 1, Fp]
        beta=jnp.stack(bts),                      # [L, 1, Fp]
    )


def gconv_forward(x, edge_index, batch, packed, num_graphs, num_layers,
                  hidden_dim):
    """Returns (z, g): node embeddings [N, H*L], graph embeddings [G, H*L]."""
    n, in_dim = x.shape
    f_pad = packed["w1"].shape[-1]
    n_pad = _round_up(n, 16)
    g_pad = _round_up(num_graphs, 16)
    num_l = num_layers

    # Padded node features (zero padding rows/cols).
    x_p = jnp.zeros((n_pad, f_pad), jnp.float32).at[:n, :in_dim].set(x)

    # Dense adjacency A[dst, src] = edge multiplicity (PyG source->target
    # flow), built directly in bf16 (small integer counts are exact).
    src, dst = edge_index[0], edge_index[1]
    a = jnp.zeros((n_pad, n_pad), jnp.bfloat16).at[dst, src].add(1.0)

    # Pooling matrix P[g, n] = 1 iff batch[n] == g, built directly in bf16.
    batch_p = jnp.full((n_pad,), -1, jnp.int32).at[:n].set(batch.astype(jnp.int32))
    p = (jnp.arange(g_pad, dtype=jnp.int32)[:, None] == batch_p[None, :]
         ).astype(jnp.bfloat16)

    # Valid-node mask for BatchNorm statistics.
    mask = (jnp.arange(n_pad) < n).astype(jnp.float32)[:, None]

    kernel = functools.partial(gconv_fused_kernel, inv_n=1.0 / n)

    flops = num_l * (2 * n_pad * n_pad * f_pad          # A @ z
                     + 4 * n_pad * f_pad * f_pad        # two Linear layers
                     + 2 * g_pad * n_pad * f_pad)       # P @ z
    bytes_accessed = (
        a.size * 2 + x_p.size * 4 + p.size * 2 + mask.size * 4
        + (packed["w1"].size + packed["w2"].size) * 2
        + (packed["b1"].size + packed["b2"].size
           + packed["gamma"].size + packed["beta"].size) * 4
        + (n_pad + g_pad) * num_l * f_pad * 2)
    cost = pl.CostEstimate(flops=int(flops), transcendentals=int(num_l * f_pad),
                           bytes_accessed=int(bytes_accessed))

    z_slab, g_slab = pl.pallas_call(
        kernel,
        out_shape=(
            jax.ShapeDtypeStruct((n_pad, num_l * f_pad), jnp.bfloat16),
            jax.ShapeDtypeStruct((g_pad, num_l * f_pad), jnp.bfloat16),
        ),
        grid_spec=pltpu.PrefetchScalarGridSpec(
            num_scalar_prefetch=0,
            grid=(num_l,),
            in_specs=[
                pl.BlockSpec(memory_space=pl.ANY),                        # A (HBM)
                pl.BlockSpec((n_pad, f_pad), lambda l: (0, 0)),           # x
                pl.BlockSpec((g_pad, n_pad), lambda l: (0, 0)),           # P
                pl.BlockSpec((n_pad, 1), lambda l: (0, 0)),               # mask
                pl.BlockSpec((None, f_pad, f_pad), lambda l: (l, 0, 0)),  # w1
                pl.BlockSpec((None, 1, f_pad), lambda l: (l, 0, 0)),      # b1
                pl.BlockSpec((None, f_pad, f_pad), lambda l: (l, 0, 0)),  # w2
                pl.BlockSpec((None, 1, f_pad), lambda l: (l, 0, 0)),      # b2
                pl.BlockSpec((None, 1, f_pad), lambda l: (l, 0, 0)),      # gamma
                pl.BlockSpec((None, 1, f_pad), lambda l: (l, 0, 0)),      # beta
            ],
            out_specs=(
                pl.BlockSpec((n_pad, f_pad), lambda l: (0, l)),   # z lane slab
                pl.BlockSpec((g_pad, f_pad), lambda l: (0, l)),   # g lane slab
            ),
            scratch_shapes=[
                pltpu.VMEM((n_pad, f_pad), jnp.float32),     # z carry (f32)
                pltpu.VMEM((n_pad, f_pad), jnp.bfloat16),    # z carry (bf16)
                pltpu.VMEM((n_pad, n_pad), jnp.bfloat16),    # adjacency buffer
                pltpu.SemaphoreType.DMA(()),                 # adjacency DMA sem
            ],
        ),
        compiler_params=pltpu.CompilerParams(
            dimension_semantics=("arbitrary",),     # layer axis carries state
            vmem_limit_bytes=64 * 1024 * 1024,
        ),
        cost_estimate=cost,
    )(a, x_p, p, mask, packed["w1"], packed["b1"], packed["w2"],
      packed["b2"], packed["gamma"], packed["beta"])

    # Un-pad: drop padding rows and padded feature lanes per layer block.
    z_cat = (z_slab[:n].reshape(n, num_l, f_pad)[:, :, :hidden_dim]
             .reshape(n, num_l * hidden_dim).astype(jnp.float32))
    g_cat = (g_slab[:num_graphs]
             .reshape(num_graphs, num_l, f_pad)[:, :, :hidden_dim]
             .reshape(num_graphs, num_l * hidden_dim).astype(jnp.float32))
    return z_cat, g_cat


# --------------------------- pure-JAX reference ------------------------------

def gconv_reference(x, edge_index, batch, params, num_graphs):
    n = x.shape[0]
    src, dst = edge_index[0], edge_index[1]
    a = jnp.zeros((n, n), jnp.float32).at[dst, src].add(1.0)
    p = (batch[None, :] == jnp.arange(num_graphs)[:, None]).astype(jnp.float32)
    z = x
    zs, gs = [], []
    for layer in params:
        h = a @ z + z
        h = jnp.maximum(h @ layer["w1"].T + layer["b1"], 0.0)
        h = h @ layer["w2"].T + layer["b2"]
        h = jnp.maximum(h, 0.0)
        mean = h.mean(axis=0, keepdims=True)
        var = ((h - mean) ** 2).mean(axis=0, keepdims=True)
        z = (h - mean) / jnp.sqrt(var + 1e-5) * layer["gamma"] + layer["beta"]
        zs.append(z)
        gs.append(p @ z)
    return jnp.concatenate(zs, axis=1), jnp.concatenate(gs, axis=1)


# --------------------------------- main --------------------------------------

if __name__ == "__main__":
    N = 64            # nodes
    E = 256           # edges
    INPUT_DIM = 8
    HIDDEN_DIM = 32
    NUM_LAYERS = 2
    NUM_GRAPHS = 4

    key = jax.random.PRNGKey(0)
    key, kx, ke, kp = jax.random.split(key, 4)

    x = jax.random.normal(kx, (N, INPUT_DIM), jnp.float32)
    edge_index = jax.random.randint(ke, (2, E), 0, N, jnp.int32)
    batch = jnp.repeat(jnp.arange(NUM_GRAPHS, dtype=jnp.int32),
                       N // NUM_GRAPHS)

    params = make_params(kp, INPUT_DIM, HIDDEN_DIM, NUM_LAYERS)
    packed = pack_params(params, INPUT_DIM, HIDDEN_DIM)

    z, g = gconv_forward(x, edge_index, batch, packed, NUM_GRAPHS,
                         NUM_LAYERS, HIDDEN_DIM)
    z, g = jax.block_until_ready((z, g))

    assert z.shape == (N, HIDDEN_DIM * NUM_LAYERS)
    assert g.shape == (NUM_GRAPHS, HIDDEN_DIM * NUM_LAYERS)
    assert bool(jnp.all(jnp.isfinite(z))) and bool(jnp.all(jnp.isfinite(g)))

    # Loose tolerance: bf16 MXU operands / bf16 output storage, f32 accumulate.
    z_ref, g_ref = gconv_reference(x, edge_index, batch, params, NUM_GRAPHS)
    assert jnp.allclose(z, z_ref, rtol=1e-1, atol=1e-1), \
        float(jnp.max(jnp.abs(z - z_ref)))
    assert jnp.allclose(g, g_ref, rtol=1e-1, atol=1e-1), \
        float(jnp.max(jnp.abs(g - g_ref)))

    print("KERNEL_OK")
</pallas_src>

<mosaic_0001>
module attributes {stable_mosaic.version = 11 : i64} {
  func.func @gconv_fused_kernel(%arg0: i32, %arg1: memref<64x64xbf16, #tpu.memory_space<any>>, %arg2: memref<64x128xf32, #tpu.memory_space<vmem>>, %arg3: memref<16x64xbf16, #tpu.memory_space<vmem>>, %arg4: memref<64x1xf32, #tpu.memory_space<vmem>>, %arg5: memref<1x128x128xbf16, #tpu.memory_space<vmem>>, %arg6: memref<1x1x128xf32, #tpu.memory_space<vmem>>, %arg7: memref<1x128x128xbf16, #tpu.memory_space<vmem>>, %arg8: memref<1x1x128xf32, #tpu.memory_space<vmem>>, %arg9: memref<1x1x128xf32, #tpu.memory_space<vmem>>, %arg10: memref<1x1x128xf32, #tpu.memory_space<vmem>>, %arg11: memref<64x128xbf16, #tpu.memory_space<vmem>>, %arg12: memref<16x128xbf16, #tpu.memory_space<vmem>>, %arg13: memref<64x128xf32, #tpu.memory_space<vmem>>, %arg14: memref<64x128xbf16, #tpu.memory_space<vmem>>, %arg15: memref<64x64xbf16, #tpu.memory_space<vmem>>, %arg16: memref<!tpu.dma_semaphore, #tpu.memory_space<semaphore_mem>>) attributes {dimension_semantics = [#tpu.dimension_semantics<arbitrary>], iteration_bounds = array<i64: 2>, scalar_prefetch = 0 : i64, scratch_operands = 4 : i64, tpu.core_type = #tpu.core_type<tc>, window_params = [{}, {pipeline_mode = #tpu.pipeline_mode<synchronous>, transform_indices = @transform_1, window_bounds = array<i64: 64, 128>}, {pipeline_mode = #tpu.pipeline_mode<synchronous>, transform_indices = @transform_2, window_bounds = array<i64: 16, 64>}, {pipeline_mode = #tpu.pipeline_mode<synchronous>, transform_indices = @transform_3, window_bounds = array<i64: 64, 1>}, {transform_indices = @transform_4, window_bounds = array<i64: 1, 128, 128>}, {transform_indices = @transform_5, window_bounds = array<i64: 1, 1, 128>}, {transform_indices = @transform_6, window_bounds = array<i64: 1, 128, 128>}, {transform_indices = @transform_7, window_bounds = array<i64: 1, 1, 128>}, {transform_indices = @transform_8, window_bounds = array<i64: 1, 1, 128>}, {transform_indices = @transform_9, window_bounds = array<i64: 1, 1, 128>}, {transform_indices = @transform_10, window_bounds = array<i64: 64, 128>}, {transform_indices = @transform_11, window_bounds = array<i64: 16, 128>}]} {
    %c0_i32 = arith.constant 0 : i32
    %0 = arith.cmpi eq, %arg0, %c0_i32 : i32
    %1 = arith.extui %0 : i1 to i32
    %c0_i32_0 = arith.constant 0 : i32
    %2 = arith.cmpi ne, %1, %c0_i32_0 : i32
    scf.if %2 {
      tpu.enqueue_dma source(%arg1 : memref<64x64xbf16, #tpu.memory_space<any>>) target(%arg15 : memref<64x64xbf16, #tpu.memory_space<vmem>>) target_semaphore(%arg16 : memref<!tpu.dma_semaphore, #tpu.memory_space<semaphore_mem>>)
      tpu.wait_dma2 semaphore(%arg16 : memref<!tpu.dma_semaphore, #tpu.memory_space<semaphore_mem>>) src(%arg1 : memref<64x64xbf16, #tpu.memory_space<any>>) dst(%arg15 : memref<64x64xbf16, #tpu.memory_space<vmem>>)
      %c0_47 = arith.constant 0 : index
      %c0_48 = arith.constant 0 : index
      %68 = vector.load %arg2[%c0_47, %c0_48] : memref<64x128xf32, #tpu.memory_space<vmem>>, vector<64x128xf32>
      %c0_49 = arith.constant 0 : index
      %c0_50 = arith.constant 0 : index
      %69 = vector.load %arg13[%c0_49, %c0_50] : memref<64x128xf32, #tpu.memory_space<vmem>>, vector<64x128xf32>
      tpu.vector_store %arg13[%c0_49, %c0_50], %68 {strides = array<i32>} : memref<64x128xf32, #tpu.memory_space<vmem>>, vector<64x128xf32>,
      %c0_51 = arith.constant 0 : index
      %c0_52 = arith.constant 0 : index
      %70 = vector.load %arg2[%c0_51, %c0_52] : memref<64x128xf32, #tpu.memory_space<vmem>>, vector<64x128xf32>
      %71 = arith.truncf %70 : vector<64x128xf32> to vector<64x128xbf16>
      %c0_53 = arith.constant 0 : index
      %c0_54 = arith.constant 0 : index
      %72 = vector.load %arg14[%c0_53, %c0_54] : memref<64x128xbf16, #tpu.memory_space<vmem>>, vector<64x128xbf16>
      tpu.vector_store %arg14[%c0_53, %c0_54], %71 {strides = array<i32>} : memref<64x128xbf16, #tpu.memory_space<vmem>>, vector<64x128xbf16>,
    } else {
    }
    %c0 = arith.constant 0 : index
    %c0_1 = arith.constant 0 : index
    %3 = vector.load %arg13[%c0, %c0_1] : memref<64x128xf32, #tpu.memory_space<vmem>>, vector<64x128xf32>
    %c0_2 = arith.constant 0 : index
    %c0_3 = arith.constant 0 : index
    %4 = vector.load %arg14[%c0_2, %c0_3] : memref<64x128xbf16, #tpu.memory_space<vmem>>, vector<64x128xbf16>
    %c0_4 = arith.constant 0 : index
    %c0_5 = arith.constant 0 : index
    %5 = vector.load %arg15[%c0_4, %c0_5] : memref<64x64xbf16, #tpu.memory_space<vmem>>, vector<64x64xbf16>
    %cst = arith.constant dense<0.000000e+00> : vector<64x128xf32>
    %6 = tpu.matmul %5, %4, %cst {dimension_numbers = #tpu.dot_dimension_numbers<[1], [0], [0], [1], [0, 0, 1, 1], [], []>} : vector<64x64xbf16>, vector<64x128xbf16>, vector<64x128xf32> -> vector<64x128xf32>
    %7 = arith.addf %6, %3 : vector<64x128xf32>
    %8 = arith.truncf %7 : vector<64x128xf32> to vector<64x128xbf16>
    %c0_6 = arith.constant 0 : index
    %c0_7 = arith.constant 0 : index
    %c0_8 = arith.constant 0 : index
    %9 = vector.load %arg5[%c0_6, %c0_7, %c0_8] : memref<1x128x128xbf16, #tpu.memory_space<vmem>>, vector<1x128x128xbf16>
    %10 = vector.shape_cast %9 : vector<1x128x128xbf16> to vector<128x128xbf16>
    %cst_9 = arith.constant dense<0.000000e+00> : vector<64x128xf32>
    %11 = tpu.matmul %8, %10, %cst_9 {dimension_numbers = #tpu.dot_dimension_numbers<[1], [0], [0], [1], [0, 0, 1, 1], [], []>} : vector<64x128xbf16>, vector<128x128xbf16>, vector<64x128xf32> -> vector<64x128xf32>
    %c0_10 = arith.constant 0 : index
    %c0_11 = arith.constant 0 : index
    %c0_12 = arith.constant 0 : index
    %12 = vector.load %arg6[%c0_10, %c0_11, %c0_12] : memref<1x1x128xf32, #tpu.memory_space<vmem>>, vector<1x1x128xf32>
    %13 = vector.shape_cast %12 : vector<1x1x128xf32> to vector<1x128xf32>
    %14 = vector.broadcast %13 : vector<1x128xf32> to vector<64x128xf32>
    %15 = arith.addf %11, %14 : vector<64x128xf32>
    %cst_13 = arith.constant 0.000000e+00 : f32
    %16 = vector.broadcast %cst_13 : f32 to vector<64x128xf32>
    %17 = arith.maximumf %15, %16 : vector<64x128xf32>
    %18 = arith.truncf %17 : vector<64x128xf32> to vector<64x128xbf16>
    %c0_14 = arith.constant 0 : index
    %c0_15 = arith.constant 0 : index
    %c0_16 = arith.constant 0 : index
    %19 = vector.load %arg7[%c0_14, %c0_15, %c0_16] : memref<1x128x128xbf16, #tpu.memory_space<vmem>>, vector<1x128x128xbf16>
    %20 = vector.shape_cast %19 : vector<1x128x128xbf16> to vector<128x128xbf16>
    %cst_17 = arith.constant dense<0.000000e+00> : vector<64x128xf32>
    %21 = tpu.matmul %18, %20, %cst_17 {dimension_numbers = #tpu.dot_dimension_numbers<[1], [0], [0], [1], [0, 0, 1, 1], [], []>} : vector<64x128xbf16>, vector<128x128xbf16>, vector<64x128xf32> -> vector<64x128xf32>
    %c0_18 = arith.constant 0 : index
    %c0_19 = arith.constant 0 : index
    %c0_20 = arith.constant 0 : index
    %22 = vector.load %arg8[%c0_18, %c0_19, %c0_20] : memref<1x1x128xf32, #tpu.memory_space<vmem>>, vector<1x1x128xf32>
    %23 = vector.shape_cast %22 : vector<1x1x128xf32> to vector<1x128xf32>
    %24 = vector.broadcast %23 : vector<1x128xf32> to vector<64x128xf32>
    %25 = arith.addf %21, %24 : vector<64x128xf32>
    %cst_21 = arith.constant 0.000000e+00 : f32
    %26 = vector.broadcast %cst_21 : f32 to vector<64x128xf32>
    %27 = arith.maximumf %25, %26 : vector<64x128xf32>
    %c0_22 = arith.constant 0 : index
    %c0_23 = arith.constant 0 : index
    %28 = vector.load %arg4[%c0_22, %c0_23] : memref<64x1xf32, #tpu.memory_space<vmem>>, vector<64x1xf32>
    %29 = vector.broadcast %28 : vector<64x1xf32> to vector<64x128xf32>
    %30 = arith.mulf %27, %29 : vector<64x128xf32>
    %cst_24 = arith.constant dense<0.000000e+00> : vector<128xf32>
    %31 = vector.multi_reduction <add>, %30, %cst_24 [0] : vector<64x128xf32> to vector<128xf32>
    %32 = vector.shape_cast %31 : vector<128xf32> to vector<1x128xf32>
    %cst_25 = arith.constant 1.562500e-02 : f32
    %33 = vector.broadcast %cst_25 : f32 to vector<1x128xf32>
    %34 = arith.mulf %32, %33 : vector<1x128xf32>
    %35 = arith.mulf %30, %27 : vector<64x128xf32>
    %cst_26 = arith.constant dense<0.000000e+00> : vector<128xf32>
    %36 = vector.multi_reduction <add>, %35, %cst_26 [0] : vector<64x128xf32> to vector<128xf32>
    %37 = vector.shape_cast %36 : vector<128xf32> to vector<1x128xf32>
    %cst_27 = arith.constant 1.562500e-02 : f32
    %38 = vector.broadcast %cst_27 : f32 to vector<1x128xf32>
    %39 = arith.mulf %37, %38 : vector<1x128xf32>
    %40 = arith.mulf %34, %34 : vector<1x128xf32>
    %41 = arith.subf %39, %40 : vector<1x128xf32>
    %cst_28 = arith.constant 0.000000e+00 : f32
    %42 = vector.broadcast %cst_28 : f32 to vector<1x128xf32>
    %43 = arith.maximumf %41, %42 : vector<1x128xf32>
    %c0_29 = arith.constant 0 : index
    %c0_30 = arith.constant 0 : index
    %c0_31 = arith.constant 0 : index
    %44 = vector.load %arg9[%c0_29, %c0_30, %c0_31] : memref<1x1x128xf32, #tpu.memory_space<vmem>>, vector<1x1x128xf32>
    %45 = vector.shape_cast %44 : vector<1x1x128xf32> to vector<1x128xf32>
    %cst_32 = arith.constant 9.99999974E-6 : f32
    %46 = vector.broadcast %cst_32 : f32 to vector<1x128xf32>
    %47 = arith.addf %43, %46 : vector<1x128xf32>
    %48 = math.rsqrt %47 : vector<1x128xf32>
    %49 = arith.mulf %45, %48 : vector<1x128xf32>
    %c0_33 = arith.constant 0 : index
    %c0_34 = arith.constant 0 : index
    %c0_35 = arith.constant 0 : index
    %50 = vector.load %arg10[%c0_33, %c0_34, %c0_35] : memref<1x1x128xf32, #tpu.memory_space<vmem>>, vector<1x1x128xf32>
    %51 = vector.shape_cast %50 : vector<1x1x128xf32> to vector<1x128xf32>
    %52 = arith.mulf %34, %49 : vector<1x128xf32>
    %53 = arith.subf %51, %52 : vector<1x128xf32>
    %54 = vector.broadcast %49 : vector<1x128xf32> to vector<64x128xf32>
    %55 = arith.mulf %27, %54 : vector<64x128xf32>
    %56 = vector.broadcast %53 : vector<1x128xf32> to vector<64x128xf32>
    %57 = arith.addf %55, %56 : vector<64x128xf32>
    %58 = vector.broadcast %28 : vector<64x1xf32> to vector<64x128xf32>
    %59 = arith.mulf %57, %58 : vector<64x128xf32>
    %60 = arith.truncf %59 : vector<64x128xf32> to vector<64x128xbf16>
    %c0_36 = arith.constant 0 : index
    %c0_37 = arith.constant 0 : index
    %61 = vector.load %arg13[%c0_36, %c0_37] : memref<64x128xf32, #tpu.memory_space<vmem>>, vector<64x128xf32>
    tpu.vector_store %arg13[%c0_36, %c0_37], %59 {strides = array<i32>} : memref<64x128xf32, #tpu.memory_space<vmem>>, vector<64x128xf32>,
    %c0_38 = arith.constant 0 : index
    %c0_39 = arith.constant 0 : index
    %62 = vector.load %arg14[%c0_38, %c0_39] : memref<64x128xbf16, #tpu.memory_space<vmem>>, vector<64x128xbf16>
    tpu.vector_store %arg14[%c0_38, %c0_39], %60 {strides = array<i32>} : memref<64x128xbf16, #tpu.memory_space<vmem>>, vector<64x128xbf16>,
    %c0_40 = arith.constant 0 : index
    %c0_41 = arith.constant 0 : index
    %63 = vector.load %arg11[%c0_40, %c0_41] : memref<64x128xbf16, #tpu.memory_space<vmem>>, vector<64x128xbf16>
    tpu.vector_store %arg11[%c0_40, %c0_41], %60 {strides = array<i32>} : memref<64x128xbf16, #tpu.memory_space<vmem>>, vector<64x128xbf16>,
    %c0_42 = arith.constant 0 : index
    %c0_43 = arith.constant 0 : index
    %64 = vector.load %arg3[%c0_42, %c0_43] : memref<16x64xbf16, #tpu.memory_space<vmem>>, vector<16x64xbf16>
    %cst_44 = arith.constant dense<0.000000e+00> : vector<16x128xf32>
    %65 = tpu.matmul %64, %60, %cst_44 {dimension_numbers = #tpu.dot_dimension_numbers<[1], [0], [0], [1], [0, 0, 1, 1], [], []>} : vector<16x64xbf16>, vector<64x128xbf16>, vector<16x128xf32> -> vector<16x128xf32>
    %66 = arith.truncf %65 : vector<16x128xf32> to vector<16x128xbf16>
    %c0_45 = arith.constant 0 : index
    %c0_46 = arith.constant 0 : index
    %67 = vector.load %arg12[%c0_45, %c0_46] : memref<16x128xbf16, #tpu.memory_space<vmem>>, vector<16x128xbf16>
    tpu.vector_store %arg12[%c0_45, %c0_46], %66 {strides = array<i32>} : memref<16x128xbf16, #tpu.memory_space<vmem>>, vector<16x128xbf16>,
    return
  }
  func.func @transform_1(%arg0: i32) -> (i32, i32) {
    %c0_i32 = arith.constant 0 : i32
    %c0_i32_0 = arith.constant 0 : i32
    %c0_i32_1 = arith.constant 0 : i32
    return %c0_i32, %c0_i32_0 : i32, i32
  }
  func.func @transform_2(%arg0: i32) -> (i32, i32) {
    %c0_i32 = arith.constant 0 : i32
    %c0_i32_0 = arith.constant 0 : i32
    %c0_i32_1 = arith.constant 0 : i32
    return %c0_i32, %c0_i32_0 : i32, i32
  }
  func.func @transform_3(%arg0: i32) -> (i32, i32) {
    %c0_i32 = arith.constant 0 : i32
    %c0_i32_0 = arith.constant 0 : i32
    %c0_i32_1 = arith.constant 0 : i32
    return %c0_i32, %c0_i32_0 : i32, i32
  }
  func.func @transform_4(%arg0: i32) -> (i32, i32, i32) {
    %c0_i32 = arith.constant 0 : i32
    %c0_i32_0 = arith.constant 0 : i32
    %c0_i32_1 = arith.constant 0 : i32
    return %arg0, %c0_i32, %c0_i32_0 : i32, i32, i32
  }
  func.func @transform_5(%arg0: i32) -> (i32, i32, i32) {
    %c0_i32 = arith.constant 0 : i32
    %c0_i32_0 = arith.constant 0 : i32
    %c0_i32_1 = arith.constant 0 : i32
    return %arg0, %c0_i32, %c0_i32_0 : i32, i32, i32
  }
  func.func @transform_6(%arg0: i32) -> (i32, i32, i32) {
    %c0_i32 = arith.constant 0 : i32
    %c0_i32_0 = arith.constant 0 : i32
    %c0_i32_1 = arith.constant 0 : i32
    return %arg0, %c0_i32, %c0_i32_0 : i32, i32, i32
  }
  func.func @transform_7(%arg0: i32) -> (i32, i32, i32) {
    %c0_i32 = arith.constant 0 : i32
    %c0_i32_0 = arith.constant 0 : i32
    %c0_i32_1 = arith.constant 0 : i32
    return %arg0, %c0_i32, %c0_i32_0 : i32, i32, i32
  }
  func.func @transform_8(%arg0: i32) -> (i32, i32, i32) {
    %c0_i32 = arith.constant 0 : i32
    %c0_i32_0 = arith.constant 0 : i32
    %c0_i32_1 = arith.constant 0 : i32
    return %arg0, %c0_i32, %c0_i32_0 : i32, i32, i32
  }
  func.func @transform_9(%arg0: i32) -> (i32, i32, i32) {
    %c0_i32 = arith.constant 0 : i32
    %c0_i32_0 = arith.constant 0 : i32
    %c0_i32_1 = arith.constant 0 : i32
    return %arg0, %c0_i32, %c0_i32_0 : i32, i32, i32
  }
  func.func @transform_10(%arg0: i32) -> (i32, i32) {
    %c0_i32 = arith.constant 0 : i32
    %c0_i32_0 = arith.constant 0 : i32
    return %c0_i32, %arg0 : i32, i32
  }
  func.func @transform_11(%arg0: i32) -> (i32, i32) {
    %c0_i32 = arith.constant 0 : i32
    %c0_i32_0 = arith.constant 0 : i32
    return %c0_i32, %arg0 : i32, i32
  }
}

</mosaic_0001>

<llo_original>
// kernel: tpu_custom_call.1
$region0: #{tpu_custom_call.1}
  #allocation0 [shape = 'u32[]', space=smem, size = 0x4, offset = 0x4, fixed_abs, tag = 'smem constant byte address 0x4 - core index']
  #allocation1 [shape = 'u32[144,128]{1,0:T(1,128)}', space=vmem, size = 0x12000, scoped, tag = 'internal scratch']
  #allocation2 [shape = 'f32[64,128]{1,0:T(8,128)}', space=vmem, size = 0x8000, scoped, tag = 'scratch operand']
  #allocation3 [shape = 'bf16[64,128]{1,0:T(16,128)(2,1)}', space=vmem, size = 0x4000, scoped, tag = 'scratch operand']
  #allocation4 [shape = 'bf16[64,64]{1,0:T(16,128)(2,1)}', space=vmem, size = 0x4000, scoped, tag = 'scratch operand']
  #allocation5 [shape = 's32[1]{0}', space=sflag, size = 0x4, scoped, tag = 'scratch operand']
  #allocation24 [shape = 's32[]', space=sflag, size = 0x4, offset = 0, fixed_abs, tag = 'sflag constant byte address 0x0 - dummy sync flag']
  #allocation25 [shape = 's32[]', space=sflag, size = 0x4, offset = 0, fixed_abs, tag = 'sflag constant byte address 0x0 - dummy sync flag']
  #allocation26 [shape = 'u32[]', space=smem, size = 0x4, offset = 0x44, fixed_abs, tag = 'smem constant byte address 0x44 - assertion arg 0']
  #allocation27 [shape = 'u32[]', space=smem, size = 0x4, offset = 0x48, fixed_abs, tag = 'smem constant byte address 0x48 - assertion arg 1']
  %s0 = inlined_call_operand.hbm [shape: bf16[64,64], index: 0, kind: input, shape index: {}]
  %s1 = inlined_call_operand.hbm [shape: f32[64,128], index: 1, kind: input, shape index: {}]
  %s2 = inlined_call_operand.hbm [shape: bf16[16,64], index: 2, kind: input, shape index: {}]
  %s3 = inlined_call_operand.hbm [shape: f32[64,1], index: 3, kind: input, shape index: {}]
  %s4 = inlined_call_operand.hbm [shape: bf16[2,128,128], index: 4, kind: input, shape index: {}]
  %s5 = inlined_call_operand.hbm [shape: f32[2,1,128], index: 5, kind: input, shape index: {}]
  %s6 = inlined_call_operand.hbm [shape: bf16[2,128,128], index: 6, kind: input, shape index: {}]
  %s7 = inlined_call_operand.hbm [shape: f32[2,1,128], index: 7, kind: input, shape index: {}]
  %s8 = inlined_call_operand.hbm [shape: f32[2,1,128], index: 8, kind: input, shape index: {}]
  %s9 = inlined_call_operand.hbm [shape: f32[2,1,128], index: 9, kind: input, shape index: {}]
  %s10 = inlined_call_operand.hbm [shape: bf16[64,256], index: 10, kind: output, shape index: {0}]
  %s11 = inlined_call_operand.hbm [shape: bf16[16,256], index: 11, kind: output, shape index: {1}]
  %12 = xla_tuple %s10, %s11
  %s13 = sld [smem:[#allocation0]]
  $region121: #{tpu_custom_call.1} parent=0
    _
  %s15 = ssub.s32 1, %s13
  %s16 = scalar_select 0, %s15, %s13
  $region1: #{tpu_custom_call.1} parent=0
    #allocation6 [shape = 'u8[32768]{0}', space=vmem, size = 0x8000, scoped, tag = 'input window, operand 1, single buffered']
    #allocation7 [shape = 's32[2]{0}', space=sflag, size = 0x8, scoped, tag = 'scoped memory for tpu_custom_call.1']
    #allocation8 [shape = 's32[2]{0}', space=sflag, size = 0x8, scoped, tag = 'scoped memory for tpu_custom_call.1']
    #allocation9 [shape = 'u8[4096]{0}', space=vmem, size = 0x1000, scoped, tag = 'input window, operand 2, single buffered']
    #allocation10 [shape = 's32[1]{0}', space=sflag, size = 0x4, scoped, tag = 'scoped memory for tpu_custom_call.1']
    #allocation11 [shape = 'u8[32768]{0}', space=vmem, size = 0x8000, scoped, tag = 'input window, operand 3, single buffered']
    #allocation12 [shape = 'u8[65536]{0}', space=vmem, size = 0x10000, scoped, tag = 'input window, operand 4']
    #allocation13 [shape = 's32[2]{0}', space=sflag, size = 0x8, scoped, tag = 'scoped memory for tpu_custom_call.1']
    #allocation14 [shape = 'u8[1024]{0}', space=vmem, size = 0x400, scoped, tag = 'input window, operand 5']
    #allocation15 [shape = 'u8[65536]{0}', space=vmem, size = 0x10000, scoped, tag = 'input window, operand 6']
    #allocation16 [shape = 's32[2]{0}', space=sflag, size = 0x8, scoped, tag = 'scoped memory for tpu_custom_call.1']
    #allocation17 [shape = 'u8[1024]{0}', space=vmem, size = 0x400, scoped, tag = 'input window, operand 7']
    #allocation18 [shape = 'u8[1024]{0}', space=vmem, size = 0x400, scoped, tag = 'input window, operand 8']
    #allocation19 [shape = 's32[2]{0}', space=sflag, size = 0x8, scoped, tag = 'scoped memory for tpu_custom_call.1']
    #allocation20 [shape = 'u8[1024]{0}', space=vmem, size = 0x400, scoped, tag = 'input window, operand 9']
    #allocation21 [shape = 'u8[32768]{0}', space=vmem, size = 0x8000, scoped, tag = 'output window, operand 0']
    #allocation22 [shape = 'u8[8192]{0}', space=vmem, size = 0x2000, scoped, tag = 'output window, operand 1']
    #allocation23 [shape = 's32[2]{0}', space=sflag, size = 0x8, scoped, tag = 'scoped memory for tpu_custom_call.1']
    %17 = vsyncpa [#allocation7], 0
    %18 = vsyncpa [#allocation10], 0
    %19 = vsyncpa [#allocation13], 0
    %s20 = scalar_lea.sflag [#allocation13], 1
    %21 = vsyncpa %s20, 0
    %22 = vsyncpa [#allocation16], 0
    %s23 = scalar_lea.sflag [#allocation16], 1
    %24 = vsyncpa %s23, 0
    %25 = vsyncpa [#allocation19], 0
    %s26 = scalar_lea.sflag [#allocation19], 1
    %27 = vsyncpa %s26, 0
    %28 = vsyncpa [#allocation8], 0
    %s29 = scalar_lea.sflag [#allocation8], 1
    %30 = vsyncpa %s29, 0
    %31 = vsyncpa [#allocation23], 0
    %s32 = scalar_lea.sflag [#allocation23], 1
    %33 = vsyncpa %s32, 0
    loop: start=0, step=1, limit=4
    $region2: #{tpu_custom_call.1} parent=1 // loop_pre_header
      _
    $region3: #{tpu_custom_call.1} parent=1 // loop_header
      %s35 = sphi 0, %s39
      %p36 = scmp.ge.s32.totalorder %s35, 4
      %s43 = sphi 0, %s43
      %s45 = sphi 0, %s43
      %s46 = sphi 0, %s45
      %s60 = sphi 0, %s46
      %s64 = sphi 0, %s64
      %s66 = sphi 0, %s64
      %s67 = sphi 0, %s66
      %s81 = sphi 0, %s67
      %s85 = sphi 0, %s85
      %s87 = sphi 0, %s85
      %s88 = sphi 0, %s87
      %s102 = sphi 0, %s88
      %s108 = sphi 0, %s110
      %s111 = sphi 0, %s108
      %s112 = sphi 0, %s111
      %s128 = sphi 0, %s112
      %s134 = sphi 0, %s136
      %s137 = sphi 0, %s134
      %s138 = sphi 0, %s137
      %s154 = sphi 0, %s138
      %s160 = sphi 0, %s162
      %s163 = sphi 0, %s160
      %s164 = sphi 0, %s163
      %s180 = sphi 0, %s164
      %s186 = sphi 0, %s188
      %s189 = sphi 0, %s186
      %s190 = sphi 0, %s189
      %s206 = sphi 0, %s190
      %s212 = sphi 0, %s214
      %s215 = sphi 0, %s212
      %s216 = sphi 0, %s215
      %s232 = sphi 0, %s216
      %s238 = sphi 0, %s240
      %s241 = sphi 0, %s238
      %s242 = sphi 0, %s241
      %s258 = sphi 0, %s242
      %s264 = sphi 0, %s266
      %s267 = sphi 0, %s264
      %s268 = sphi 0, %s267
      %s284 = sphi 0, %s268
      %s290 = sphi 0, %s292
      %s293 = sphi 0, %s290
      %s294 = sphi 0, %s293
      %s310 = sphi 0, %s294
    $region4: #{tpu_custom_call.1} parent=1 // loop_header_branch
      %38 = sbr.rel (%p36) target = $region8
    $region5: #{tpu_custom_call.1} parent=1 // loop_body
      %s40 = ssub.s32 %s35, 1
      %s41 = ssub.s32 %s35, 2
      %s42 = sadd.s32 %s35, 1
      %s44 = sadd.s32 %s43, 1
      %p47 = scmp.eq.s32.totalorder %s35, 1
      %p48 = scmp.ne.s32.totalorder %s43, %s45
      %p49 = scmp.eq.s32.totalorder %s35, 0
      %p50 = por %p48, %p49
      %p51 = scmp.ne.s32.totalorder %s43, %s45
      %p52 = scmp.eq.s32.totalorder %s40, 1
      %p53 = por %p51, %p52
      %p54 = scmp.ne.s32.totalorder %s45, %s46
      %p55 = scmp.eq.s32.totalorder %s40, 0
      %p56 = por %p54, %p55
      %p57 = scmp.ne.s32.totalorder %s45, %s46
      %p58 = scmp.eq.s32.totalorder %s41, 1
      %p59 = por %p57, %p58
      %p61 = scmp.ne.s32.totalorder %s46, %s60
      %p62 = scmp.eq.s32.totalorder %s41, 0
      %p63 = por %p61, %p62
      %s65 = sadd.s32 %s64, 1
      %p68 = scmp.eq.s32.totalorder %s35, 1
      %p69 = scmp.ne.s32.totalorder %s64, %s66
      %p70 = scmp.eq.s32.totalorder %s35, 0
      %p71 = por %p69, %p70
      %p72 = scmp.ne.s32.totalorder %s64, %s66
      %p73 = scmp.eq.s32.totalorder %s40, 1
      %p74 = por %p72, %p73
      %p75 = scmp.ne.s32.totalorder %s66, %s67
      %p76 = scmp.eq.s32.totalorder %s40, 0
      %p77 = por %p75, %p76
      %p78 = scmp.ne.s32.totalorder %s66, %s67
      %p79 = scmp.eq.s32.totalorder %s41, 1
      %p80 = por %p78, %p79
      %p82 = scmp.ne.s32.totalorder %s67, %s81
      %p83 = scmp.eq.s32.totalorder %s41, 0
      %p84 = por %p82, %p83
      %s86 = sadd.s32 %s85, 1
      %p89 = scmp.eq.s32.totalorder %s35, 1
      %p90 = scmp.ne.s32.totalorder %s85, %s87
      %p91 = scmp.eq.s32.totalorder %s35, 0
      %p92 = por %p90, %p91
      %p93 = scmp.ne.s32.totalorder %s85, %s87
      %p94 = scmp.eq.s32.totalorder %s40, 1
      %p95 = por %p93, %p94
      %p96 = scmp.ne.s32.totalorder %s87, %s88
      %p97 = scmp.eq.s32.totalorder %s40, 0
      %p98 = por %p96, %p97
      %p99 = scmp.ne.s32.totalorder %s87, %s88
      %p100 = scmp.eq.s32.totalorder %s41, 1
      %p101 = por %p99, %p100
      %p103 = scmp.ne.s32.totalorder %s88, %s102
      %p104 = scmp.eq.s32.totalorder %s41, 0
      %p105 = por %p103, %p104
      %s106 = ssub.s32 %s35, %s42
      %p107 = scmp.eq.s32.totalorder %s106, 0
      %s109 = sadd.s32 %s108, 1
      %s110 = scalar_select %p107, %s108, %s109
      %p113 = pneg %p107
      %p114 = scmp.eq.s32.totalorder %s35, 1
      %p115 = por %p113, %p114
      %p116 = scmp.ne.s32.totalorder %s108, %s111
      %p117 = scmp.eq.s32.totalorder %s35, 0
      %p118 = por %p116, %p117
      %p119 = scmp.ne.s32.totalorder %s108, %s111
      %p120 = scmp.eq.s32.totalorder %s40, 1
      %p121 = por %p119, %p120
      %p122 = scmp.ne.s32.totalorder %s111, %s112
      %p123 = scmp.eq.s32.totalorder %s40, 0
      %p124 = por %p122, %p123
      %p125 = scmp.ne.s32.totalorder %s111, %s112
      %p126 = scmp.eq.s32.totalorder %s41, 1
      %p127 = por %p125, %p126
      %p129 = scmp.ne.s32.totalorder %s112, %s128
      %p130 = scmp.eq.s32.totalorder %s41, 0
      %p131 = por %p129, %p130
      %s132 = ssub.s32 %s35, %s42
      %p133 = scmp.eq.s32.totalorder %s132, 0
      %s135 = sadd.s32 %s134, 1
      %s136 = scalar_select %p133, %s134, %s135
      %p139 = pneg %p133
      %p140 = scmp.eq.s32.totalorder %s35, 1
      %p141 = por %p139, %p140
      %p142 = scmp.ne.s32.totalorder %s134, %s137
      %p143 = scmp.eq.s32.totalorder %s35, 0
      %p144 = por %p142, %p143
      %p145 = scmp.ne.s32.totalorder %s134, %s137
      %p146 = scmp.eq.s32.totalorder %s40, 1
      %p147 = por %p145, %p146
      %p148 = scmp.ne.s32.totalorder %s137, %s138
      %p149 = scmp.eq.s32.totalorder %s40, 0
      %p150 = por %p148, %p149
      %p151 = scmp.ne.s32.totalorder %s137, %s138
      %p152 = scmp.eq.s32.totalorder %s41, 1
      %p153 = por %p151, %p152
      %p155 = scmp.ne.s32.totalorder %s138, %s154
      %p156 = scmp.eq.s32.totalorder %s41, 0
      %p157 = por %p155, %p156
      %s158 = ssub.s32 %s35, %s42
      %p159 = scmp.eq.s32.totalorder %s158, 0
      %s161 = sadd.s32 %s160, 1
      %s162 = scalar_select %p159, %s160, %s161
      %p165 = pneg %p159
      %p166 = scmp.eq.s32.totalorder %s35, 1
      %p167 = por %p165, %p166
      %p168 = scmp.ne.s32.totalorder %s160, %s163
      %p169 = scmp.eq.s32.totalorder %s35, 0
      %p170 = por %p168, %p169
      %p171 = scmp.ne.s32.totalorder %s160, %s163
      %p172 = scmp.eq.s32.totalorder %s40, 1
      %p173 = por %p171, %p172
      %p174 = scmp.ne.s32.totalorder %s163, %s164
      %p175 = scmp.eq.s32.totalorder %s40, 0
      %p176 = por %p174, %p175
      %p177 = scmp.ne.s32.totalorder %s163, %s164
      %p178 = scmp.eq.s32.totalorder %s41, 1
      %p179 = por %p177, %p178
      %p181 = scmp.ne.s32.totalorder %s164, %s180
      %p182 = scmp.eq.s32.totalorder %s41, 0
      %p183 = por %p181, %p182
      %s184 = ssub.s32 %s35, %s42
      %p185 = scmp.eq.s32.totalorder %s184, 0
      %s187 = sadd.s32 %s186, 1
      %s188 = scalar_select %p185, %s186, %s187
      %p191 = pneg %p185
      %p192 = scmp.eq.s32.totalorder %s35, 1
      %p193 = por %p191, %p192
      %p194 = scmp.ne.s32.totalorder %s186, %s189
      %p195 = scmp.eq.s32.totalorder %s35, 0
      %p196 = por %p194, %p195
      %p197 = scmp.ne.s32.totalorder %s186, %s189
      %p198 = scmp.eq.s32.totalorder %s40, 1
      %p199 = por %p197, %p198
      %p200 = scmp.ne.s32.totalorder %s189, %s190
      %p201 = scmp.eq.s32.totalorder %s40, 0
      %p202 = por %p200, %p201
      %p203 = scmp.ne.s32.totalorder %s189, %s190
      %p204 = scmp.eq.s32.totalorder %s41, 1
      %p205 = por %p203, %p204
      %p207 = scmp.ne.s32.totalorder %s190, %s206
      %p208 = scmp.eq.s32.totalorder %s41, 0
      %p209 = por %p207, %p208
      %s210 = ssub.s32 %s35, %s42
      %p211 = scmp.eq.s32.totalorder %s210, 0
      %s213 = sadd.s32 %s212, 1
      %s214 = scalar_select %p211, %s212, %s213
      %p217 = pneg %p211
      %p218 = scmp.eq.s32.totalorder %s35, 1
      %p219 = por %p217, %p218
      %p220 = scmp.ne.s32.totalorder %s212, %s215
      %p221 = scmp.eq.s32.totalorder %s35, 0
      %p222 = por %p220, %p221
      %p223 = scmp.ne.s32.totalorder %s212, %s215
      %p224 = scmp.eq.s32.totalorder %s40, 1
      %p225 = por %p223, %p224
      %p226 = scmp.ne.s32.totalorder %s215, %s216
      %p227 = scmp.eq.s32.totalorder %s40, 0
      %p228 = por %p226, %p227
      %p229 = scmp.ne.s32.totalorder %s215, %s216
      %p230 = scmp.eq.s32.totalorder %s41, 1
      %p231 = por %p229, %p230
      %p233 = scmp.ne.s32.totalorder %s216, %s232
      %p234 = scmp.eq.s32.totalorder %s41, 0
      %p235 = por %p233, %p234
      %s236 = ssub.s32 %s35, %s42
      %p237 = scmp.eq.s32.totalorder %s236, 0
      %s239 = sadd.s32 %s238, 1
      %s240 = scalar_select %p237, %s238, %s239
      %p243 = pneg %p237
      %p244 = scmp.eq.s32.totalorder %s35, 1
      %p245 = por %p243, %p244
      %p246 = scmp.ne.s32.totalorder %s238, %s241
      %p247 = scmp.eq.s32.totalorder %s35, 0
      %p248 = por %p246, %p247
      %p249 = scmp.ne.s32.totalorder %s238, %s241
      %p250 = scmp.eq.s32.totalorder %s40, 1
      %p251 = por %p249, %p250
      %p252 = scmp.ne.s32.totalorder %s241, %s242
      %p253 = scmp.eq.s32.totalorder %s40, 0
      %p254 = por %p252, %p253
      %p255 = scmp.ne.s32.totalorder %s241, %s242
      %p256 = scmp.eq.s32.totalorder %s41, 1
      %p257 = por %p255, %p256
      %p259 = scmp.ne.s32.totalorder %s242, %s258
      %p260 = scmp.eq.s32.totalorder %s41, 0
      %p261 = por %p259, %p260
      %s262 = ssub.s32 %s35, %s42
      %p263 = scmp.eq.s32.totalorder %s262, 0
      %s265 = sadd.s32 %s264, 1
      %s266 = scalar_select %p263, %s264, %s265
      %p269 = pneg %p263
      %p270 = scmp.eq.s32.totalorder %s35, 1
      %p271 = por %p269, %p270
      %p272 = scmp.ne.s32.totalorder %s264, %s267
      %p273 = scmp.eq.s32.totalorder %s35, 0
      %p274 = por %p272, %p273
      %p275 = scmp.ne.s32.totalorder %s264, %s267
      %p276 = scmp.eq.s32.totalorder %s40, 1
      %p277 = por %p275, %p276
      %p278 = scmp.ne.s32.totalorder %s267, %s268
      %p279 = scmp.eq.s32.totalorder %s40, 0
      %p280 = por %p278, %p279
      %p281 = scmp.ne.s32.totalorder %s267, %s268
      %p282 = scmp.eq.s32.totalorder %s41, 1
      %p283 = por %p281, %p282
      %p285 = scmp.ne.s32.totalorder %s268, %s284
      %p286 = scmp.eq.s32.totalorder %s41, 0
      %p287 = por %p285, %p286
      %s288 = ssub.s32 %s35, %s42
      %p289 = scmp.eq.s32.totalorder %s288, 0
      %s291 = sadd.s32 %s290, 1
      %s292 = scalar_select %p289, %s290, %s291
      %p295 = pneg %p289
      %p296 = scmp.eq.s32.totalorder %s35, 1
      %p297 = por %p295, %p296
      %p298 = scmp.ne.s32.totalorder %s290, %s293
      %p299 = scmp.eq.s32.totalorder %s35, 0
      %p300 = por %p298, %p299
      %p301 = scmp.ne.s32.totalorder %s290, %s293
      %p302 = scmp.eq.s32.totalorder %s40, 1
      %p303 = por %p301, %p302
      %p304 = scmp.ne.s32.totalorder %s293, %s294
      %p305 = scmp.eq.s32.totalorder %s40, 0
      %p306 = por %p304, %p305
      %p307 = scmp.ne.s32.totalorder %s293, %s294
      %p308 = scmp.eq.s32.totalorder %s41, 1
      %p309 = por %p307, %p308
      %p311 = scmp.ne.s32.totalorder %s294, %s310
      %p312 = scmp.eq.s32.totalorder %s41, 0
      %p313 = por %p311, %p312
      %p314 = scmp.le.s32.totalorder 1, %s35
      %p315 = scmp.lt.s32.totalorder %s35, 3
      %p316 = pnand %p314, %p315
      %p317 = pneg %p316
      // Predicated region
      $region9: #{tpu_custom_call.1} parent=5 // pred_check
        _
      $region10: #{tpu_custom_call.1} parent=5 // pred_check_branch
        %319 = sbr.rel (%p316) target = $region12
      $region11: #{tpu_custom_call.1} parent=5 // pred_region
        %s320 = ssub.s32 %s35, 1
        // Predicated region
        $region13: #{tpu_custom_call.1} parent=11 // pred_check
          %p321 = pneg %p56
        $region14: #{tpu_custom_call.1} parent=11 // pred_check_branch
          %323 = sbr.rel (%p321) target = $region16
        $region15: #{tpu_custom_call.1} parent=11 // pred_region
          %s325 = ssub.s32 1024, 1024
          %326 = vsyncadd [#allocation7], %s325
          %s327 = sshll.u32 [#allocation6], 4
          %s328 = int_to_ptr.vmem [resolvable:$true] %s327
          %333 = dma.hbm_to_vmem [thread:$0]  %s1, 1024, %s328, [#allocation7], 128, 128, 8
        $region16: #{tpu_custom_call.1} parent=11 // pred_fallthru
          _
        // Predicated region
        $region17: #{tpu_custom_call.1} parent=11 // pred_check
          %p334 = pneg %p77
        $region18: #{tpu_custom_call.1} parent=11 // pred_check_branch
          %336 = sbr.rel (%p334) target = $region20
        $region19: #{tpu_custom_call.1} parent=11 // pred_region
          %s338 = ssub.s32 128, 128
          %339 = vsyncadd [#allocation10], %s338
          %s340 = sshll.u32 [#allocation9], 4
          %s341 = int_to_ptr.vmem [resolvable:$true] %s340
          %346 = dma.hbm_to_vmem [thread:$0]  %s2, 128, %s341, [#allocation10], 64, 64, 4
        $region20: #{tpu_custom_call.1} parent=11 // pred_fallthru
          _
        // Predicated region
        $region21: #{tpu_custom_call.1} parent=11 // pred_check
          %p347 = pneg %p98
        $region22: #{tpu_custom_call.1} parent=11 // pred_check_branch
          %349 = sbr.rel (%p347) target = $region24
        $region23: #{tpu_custom_call.1} parent=11 // pred_region
          %s351 = ssub.s32 1024, 1024
          %352 = vsyncadd [#allocation10], %s351
          %s353 = sshll.u32 [#allocation11], 4
          %s354 = int_to_ptr.vmem [resolvable:$true] %s353
          %359 = dma.hbm_to_vmem [thread:$0]  %s3, 1024, %s354, [#allocation10], 128, 128, 8
        $region24: #{tpu_custom_call.1} parent=11 // pred_fallthru
          _
      $region12: #{tpu_custom_call.1} parent=5 // pred_fallthru
        _
      %p360 = scmp.lt.s32.totalorder %s35, 2
      // Predicated region
      $region25: #{tpu_custom_call.1} parent=5 // pred_check
        %p361 = pneg %p360
      $region26: #{tpu_custom_call.1} parent=5 // pred_check_branch
        %363 = sbr.rel (%p361) target = $region28
      $region27: #{tpu_custom_call.1} parent=5 // pred_region
        // Predicated region
        $region29: #{tpu_custom_call.1} parent=27 // pred_check
          %p364 = pneg %p118
        $region30: #{tpu_custom_call.1} parent=27 // pred_check_branch
          %366 = sbr.rel (%p364) target = $region32
        $region31: #{tpu_custom_call.1} parent=27 // pred_region
          %s367 = sand.u32 %s35, 1
          %s368 = scalar_lea.sflag [#allocation13], %s367
          %s369 = sand.u32 %s108, 1
          %s370 = smul.addr %s369, 64
          %s371 = scalar_lea.vmem [#allocation12], %s370
          %s373 = ssub.s32 1024, 1024
          %374 = vsyncadd %s368, %s373
          %s375 = smul.addr %s35, 16
          %s376 = smul.addr %s375, 64
          %s377 = scalar_lea.hbm %s4, %s376
          %s378 = sshll.u32 %s371, 4
          %s379 = int_to_ptr.vmem [resolvable:$true] %s378
          %384 = dma.hbm_to_vmem [thread:$0]  %s377, 1024, %s379, %s368, 64, 64, 4
        $region32: #{tpu_custom_call.1} parent=27 // pred_fallthru
          _
        // Predicated region
        $region33: #{tpu_custom_call.1} parent=27 // pred_check
          %p385 = pneg %p144
        $region34: #{tpu_custom_call.1} parent=27 // pred_check_branch
          %387 = sbr.rel (%p385) target = $region36
        $region35: #{tpu_custom_call.1} parent=27 // pred_region
          %s388 = sand.u32 %s35, 1
          %s389 = scalar_lea.sflag [#allocation13], %s388
          %s390 = sand.u32 %s134, 1
          %s391 = scalar_lea.vmem [#allocation14], %s390
          %s393 = ssub.s32 16, 16
          %394 = vsyncadd %s389, %s393
          %s395 = smul.addr %s35, 16
          %s396 = scalar_lea.hbm %s5, %s395
          %s398 = sshll.u32 %s391, 4
          %s399 = int_to_ptr.vmem [resolvable:$true] %s398
          %401 = dma.hbm_to_vmem [thread:$0]  %s396, 16, %s399, %s389
        $region36: #{tpu_custom_call.1} parent=27 // pred_fallthru
          _
        // Predicated region
        $region37: #{tpu_custom_call.1} parent=27 // pred_check
          %p402 = pneg %p170
        $region38: #{tpu_custom_call.1} parent=27 // pred_check_branch
          %404 = sbr.rel (%p402) target = $region40
        $region39: #{tpu_custom_call.1} parent=27 // pred_region
          %s405 = sand.u32 %s35, 1
          %s406 = scalar_lea.sflag [#allocation16], %s405
          %s407 = sand.u32 %s160, 1
          %s408 = smul.addr %s407, 64
          %s409 = scalar_lea.vmem [#allocation15], %s408
          %s411 = ssub.s32 1024, 1024
          %412 = vsyncadd %s406, %s411
          %s413 = smul.addr %s35, 16
          %s414 = smul.addr %s413, 64
          %s415 = scalar_lea.hbm %s6, %s414
          %s416 = sshll.u32 %s409, 4
          %s417 = int_to_ptr.vmem [resolvable:$true] %s416
          %422 = dma.hbm_to_vmem [thread:$0]  %s415, 1024, %s417, %s406, 64, 64, 4
        $region40: #{tpu_custom_call.1} parent=27 // pred_fallthru
          _
        // Predicated region
        $region41: #{tpu_custom_call.1} parent=27 // pred_check
          %p423 = pneg %p196
        $region42: #{tpu_custom_call.1} parent=27 // pred_check_branch
          %425 = sbr.rel (%p423) target = $region44
        $region43: #{tpu_custom_call.1} parent=27 // pred_region
          %s426 = sand.u32 %s35, 1
          %s427 = scalar_lea.sflag [#allocation16], %s426
          %s428 = sand.u32 %s186, 1
          %s429 = scalar_lea.vmem [#allocation17], %s428
          %s431 = ssub.s32 16, 16
          %432 = vsyncadd %s427, %s431
          %s433 = smul.addr %s35, 16
          %s434 = scalar_lea.hbm %s7, %s433
          %s436 = sshll.u32 %s429, 4
          %s437 = int_to_ptr.vmem [resolvable:$true] %s436
          %439 = dma.hbm_to_vmem [thread:$0]  %s434, 16, %s437, %s427
        $region44: #{tpu_custom_call.1} parent=27 // pred_fallthru
          _
        // Predicated region
        $region45: #{tpu_custom_call.1} parent=27 // pred_check
          %p440 = pneg %p222
        $region46: #{tpu_custom_call.1} parent=27 // pred_check_branch
          %442 = sbr.rel (%p440) target = $region48
        $region47: #{tpu_custom_call.1} parent=27 // pred_region
          %s443 = sand.u32 %s35, 1
          %s444 = scalar_lea.sflag [#allocation19], %s443
          %s445 = sand.u32 %s212, 1
          %s446 = scalar_lea.vmem [#allocation18], %s445
          %s448 = ssub.s32 16, 16
          %449 = vsyncadd %s444, %s448
          %s450 = smul.addr %s35, 16
          %s451 = scalar_lea.hbm %s8, %s450
          %s453 = sshll.u32 %s446, 4
          %s454 = int_to_ptr.vmem [resolvable:$true] %s453
          %456 = dma.hbm_to_vmem [thread:$0]  %s451, 16, %s454, %s444
        $region48: #{tpu_custom_call.1} parent=27 // pred_fallthru
          _
        // Predicated region
        $region49: #{tpu_custom_call.1} parent=27 // pred_check
          %p457 = pneg %p248
        $region50: #{tpu_custom_call.1} parent=27 // pred_check_branch
          %459 = sbr.rel (%p457) target = $region52
        $region51: #{tpu_custom_call.1} parent=27 // pred_region
          %s460 = sand.u32 %s35, 1
          %s461 = scalar_lea.sflag [#allocation19], %s460
          %s462 = sand.u32 %s238, 1
          %s463 = scalar_lea.vmem [#allocation20], %s462
          %s465 = ssub.s32 16, 16
          %466 = vsyncadd %s461, %s465
          %s467 = smul.addr %s35, 16
          %s468 = scalar_lea.hbm %s9, %s467
          %s470 = sshll.u32 %s463, 4
          %s471 = int_to_ptr.vmem [resolvable:$true] %s470
          %473 = dma.hbm_to_vmem [thread:$0]  %s468, 16, %s471, %s461
        $region52: #{tpu_custom_call.1} parent=27 // pred_fallthru
          _
      $region28: #{tpu_custom_call.1} parent=5 // pred_fallthru
        _
      %p474 = scmp.le.s32.totalorder 1, %s35
      %p475 = scmp.lt.s32.totalorder %s35, 3
      %p476 = pnand %p474, %p475
      %p477 = pneg %p476
      // Predicated region
      $region53: #{tpu_custom_call.1} parent=5 // pred_check
        _
      $region54: #{tpu_custom_call.1} parent=5 // pred_check_branch
        %479 = sbr.rel (%p476) target = $region56
      $region55: #{tpu_custom_call.1} parent=5 // pred_region
        %s480 = ssub.s32 %s35, 1
        // Predicated region
        $region57: #{tpu_custom_call.1} parent=55 // pred_check
          %p481 = pneg %p56
        $region58: #{tpu_custom_call.1} parent=55 // pred_check_branch
          %483 = sbr.rel (%p481) target = $region60
        $region59: #{tpu_custom_call.1} parent=55 // pred_region
          %484 = dma.done [#allocation7], 1024
        $region60: #{tpu_custom_call.1} parent=55 // pred_fallthru
          _
        // Predicated region
        $region61: #{tpu_custom_call.1} parent=55 // pred_check
          %p485 = pneg %p77
        $region62: #{tpu_custom_call.1} parent=55 // pred_check_branch
          %487 = sbr.rel (%p485) target = $region64
        $region63: #{tpu_custom_call.1} parent=55 // pred_region
          %488 = dma.done [#allocation10], 128
        $region64: #{tpu_custom_call.1} parent=55 // pred_fallthru
          _
        // Predicated region
        $region65: #{tpu_custom_call.1} parent=55 // pred_check
          %p489 = pneg %p98
        $region66: #{tpu_custom_call.1} parent=55 // pred_check_branch
          %491 = sbr.rel (%p489) target = $region68
        $region67: #{tpu_custom_call.1} parent=55 // pred_region
          %492 = dma.done [#allocation10], 1024
        $region68: #{tpu_custom_call.1} parent=55 // pred_fallthru
          _
        %s493 = sand.u32 %s40, 1
        %s494 = scalar_lea.sflag [#allocation13], %s493
        %s495 = sand.u32 %s111, 1
        %s496 = smul.addr %s495, 64
        %s497 = scalar_lea.vmem [#allocation12], %s496
        // Predicated region
        $region69: #{tpu_custom_call.1} parent=55 // pred_check
          %p498 = pneg %p124
        $region70: #{tpu_custom_call.1} parent=55 // pred_check_branch
          %500 = sbr.rel (%p498) target = $region72
        $region71: #{tpu_custom_call.1} parent=55 // pred_region
          %501 = dma.done %s494, 1024
        $region72: #{tpu_custom_call.1} parent=55 // pred_fallthru
          _
        %s502 = sand.u32 %s40, 1
        %s503 = scalar_lea.sflag [#allocation13], %s502
        %s504 = sand.u32 %s137, 1
        %s505 = scalar_lea.vmem [#allocation14], %s504
        // Predicated region
        $region73: #{tpu_custom_call.1} parent=55 // pred_check
          %p506 = pneg %p150
        $region74: #{tpu_custom_call.1} parent=55 // pred_check_branch
          %508 = sbr.rel (%p506) target = $region76
        $region75: #{tpu_custom_call.1} parent=55 // pred_region
          %509 = dma.done %s503, 16
        $region76: #{tpu_custom_call.1} parent=55 // pred_fallthru
          _
        %s510 = sand.u32 %s40, 1
        %s511 = scalar_lea.sflag [#allocation16], %s510
        %s512 = sand.u32 %s163, 1
        %s513 = smul.addr %s512, 64
        %s514 = scalar_lea.vmem [#allocation15], %s513
        // Predicated region
        $region77: #{tpu_custom_call.1} parent=55 // pred_check
          %p515 = pneg %p176
        $region78: #{tpu_custom_call.1} parent=55 // pred_check_branch
          %517 = sbr.rel (%p515) target = $region80
        $region79: #{tpu_custom_call.1} parent=55 // pred_region
          %518 = dma.done %s511, 1024
        $region80: #{tpu_custom_call.1} parent=55 // pred_fallthru
          _
        %s519 = sand.u32 %s40, 1
        %s520 = scalar_lea.sflag [#allocation16], %s519
        %s521 = sand.u32 %s189, 1
        %s522 = scalar_lea.vmem [#allocation17], %s521
        // Predicated region
        $region81: #{tpu_custom_call.1} parent=55 // pred_check
          %p523 = pneg %p202
        $region82: #{tpu_custom_call.1} parent=55 // pred_check_branch
          %525 = sbr.rel (%p523) target = $region84
        $region83: #{tpu_custom_call.1} parent=55 // pred_region
          %526 = dma.done %s520, 16
        $region84: #{tpu_custom_call.1} parent=55 // pred_fallthru
          _
        %s527 = sand.u32 %s40, 1
        %s528 = scalar_lea.sflag [#allocation19], %s527
        %s529 = sand.u32 %s215, 1
        %s530 = scalar_lea.vmem [#allocation18], %s529
        // Predicated region
        $region85: #{tpu_custom_call.1} parent=55 // pred_check
          %p531 = pneg %p228
        $region86: #{tpu_custom_call.1} parent=55 // pred_check_branch
          %533 = sbr.rel (%p531) target = $region88
        $region87: #{tpu_custom_call.1} parent=55 // pred_region
          %534 = dma.done %s528, 16
        $region88: #{tpu_custom_call.1} parent=55 // pred_fallthru
          _
        %s535 = sand.u32 %s40, 1
        %s536 = scalar_lea.sflag [#allocation19], %s535
        %s537 = sand.u32 %s241, 1
        %s538 = scalar_lea.vmem [#allocation20], %s537
        // Predicated region
        $region89: #{tpu_custom_call.1} parent=55 // pred_check
          %p539 = pneg %p254
        $region90: #{tpu_custom_call.1} parent=55 // pred_check_branch
          %541 = sbr.rel (%p539) target = $region92
        $region91: #{tpu_custom_call.1} parent=55 // pred_region
          %542 = dma.done %s536, 16
        $region92: #{tpu_custom_call.1} parent=55 // pred_fallthru
          _
        %p543 = pneg %p56
        %p544 = pneg %p53
        %p545 = pneg %p77
        %p546 = pneg %p74
        %p547 = pneg %p98
        %p548 = pneg %p95
        %s549 = sand.u32 %s40, 1
        %s550 = scalar_lea.sflag [#allocation13], %s549
        %s551 = sand.u32 %s111, 1
        %s552 = smul.addr %s551, 64
        %s553 = scalar_lea.vmem [#allocation12], %s552
        %p554 = pneg %p124
        %p555 = pneg %p121
        %s556 = sand.u32 %s40, 1
        %s557 = scalar_lea.sflag [#allocation13], %s556
        %s558 = sand.u32 %s137, 1
        %s559 = scalar_lea.vmem [#allocation14], %s558
        %p560 = pneg %p150
        %p561 = pneg %p147
        %s562 = sand.u32 %s40, 1
        %s563 = scalar_lea.sflag [#allocation16], %s562
        %s564 = sand.u32 %s163, 1
        %s565 = smul.addr %s564, 64
        %s566 = scalar_lea.vmem [#allocation15], %s565
        %p567 = pneg %p176
        %p568 = pneg %p173
        %s569 = sand.u32 %s40, 1
        %s570 = scalar_lea.sflag [#allocation16], %s569
        %s571 = sand.u32 %s189, 1
        %s572 = scalar_lea.vmem [#allocation17], %s571
        %p573 = pneg %p202
        %p574 = pneg %p199
        %s575 = sand.u32 %s40, 1
        %s576 = scalar_lea.sflag [#allocation19], %s575
        %s577 = sand.u32 %s215, 1
        %s578 = scalar_lea.vmem [#allocation18], %s577
        %p579 = pneg %p228
        %p580 = pneg %p225
        %s581 = sand.u32 %s40, 1
        %s582 = scalar_lea.sflag [#allocation19], %s581
        %s583 = sand.u32 %s241, 1
        %s584 = scalar_lea.vmem [#allocation20], %s583
        %p585 = pneg %p254
        %p586 = pneg %p251
        %p587 = pneg %p280
        %p588 = pneg %p277
        %s589 = sand.u32 %s267, 1
        %s590 = scalar_lea.sflag [#allocation8], %s589
        %s591 = sand.u32 %s267, 1
        %s592 = smul.addr %s591, 32
        %s593 = scalar_lea.vmem [#allocation21], %s592
        %p594 = pneg %p306
        %p595 = pneg %p303
        %s596 = sand.u32 %s293, 1
        %s597 = scalar_lea.sflag [#allocation23], %s596
        %s598 = sand.u32 %s293, 1
        %s599 = smul.addr %s598, 8
        %s600 = scalar_lea.vmem [#allocation22], %s599
        %p602 = scmp.eq.s32.totalorder %s40, 0
        // Predicated region
        $region93: #{tpu_custom_call.1} parent=55 // pred_check
          %p603 = pneg %p602
        $region94: #{tpu_custom_call.1} parent=55 // pred_check_branch
          %605 = sbr.rel (%p603) target = $region96
        $region95: #{tpu_custom_call.1} parent=55 // pred_region
          // Predicated region
          $region97: #{tpu_custom_call.1} parent=95 // pred_check
            _
          $region98: #{tpu_custom_call.1} parent=95 // pred_check_branch
            %607 = sbr.rel target = $region100
          $region99: #{tpu_custom_call.1} parent=95 // pred_region
            %608 = sst [smem:[#allocation26]] [#allocation25]
            %609 = sst [smem:[#allocation27]] [#allocation24]
          $region100: #{tpu_custom_call.1} parent=95 // pred_fallthru
            _
          %611 = shalt.err (0)
          %s613 = sshll.u32 [#allocation4], 4
          %s614 = int_to_ptr.vmem [resolvable:$true] %s613
          %616 = dma.hbm_to_vmem [thread:$0]  %s0, 512, %s614, [#allocation5]
          %s617 = smul.u32 4, 8
          %s618 = smul.u32 %s617, 1
          %s619 = sshll.u32 %s618, 4
          %620 = dma.done [#allocation5], %s619
          %v621 = vld [vmem:[#allocation6] sm:$0xff]
          %v622 = vld [vmem:[#allocation6 + $0x8] sm:$0xff]
          %v623 = vld [vmem:[#allocation6 + $0x10] sm:$0xff]
          %v624 = vld [vmem:[#allocation6 + $0x18] sm:$0xff]
          %v625 = vld [vmem:[#allocation6 + $0x20] sm:$0xff]
          %v626 = vld [vmem:[#allocation6 + $0x28] sm:$0xff]
          %v627 = vld [vmem:[#allocation6 + $0x30] sm:$0xff]
          %v628 = vld [vmem:[#allocation6 + $0x38] sm:$0xff]
          %629 = vst [vmem:[#allocation2] sm:$0xff] %v621
          %630 = vst [vmem:[#allocation2 + $0x8] sm:$0xff] %v622
          %631 = vst [vmem:[#allocation2 + $0x10] sm:$0xff] %v623
          %632 = vst [vmem:[#allocation2 + $0x18] sm:$0xff] %v624
          %633 = vst [vmem:[#allocation2 + $0x20] sm:$0xff] %v625
          %634 = vst [vmem:[#allocation2 + $0x28] sm:$0xff] %v626
          %635 = vst [vmem:[#allocation2 + $0x30] sm:$0xff] %v627
          %636 = vst [vmem:[#allocation2 + $0x38] sm:$0xff] %v628
          %v637 = vld [vmem:[#allocation6] sm:$0xff]
          %v638 = vld [vmem:[#allocation6 + $0x8] sm:$0xff]
          %v639 = vld [vmem:[#allocation6 + $0x10] sm:$0xff]
          %v640 = vld [vmem:[#allocation6 + $0x18] sm:$0xff]
          %v641 = vld [vmem:[#allocation6 + $0x20] sm:$0xff]
          %v642 = vld [vmem:[#allocation6 + $0x28] sm:$0xff]
          %v643 = vld [vmem:[#allocation6 + $0x30] sm:$0xff]
          %v644 = vld [vmem:[#allocation6 + $0x38] sm:$0xff]
          %v645 = vpack.c.bf16 %v638, %v637
          %v646 = vpack.c.bf16 %v640, %v639
          %v647 = vpack.c.bf16 %v642, %v641
          %v648 = vpack.c.bf16 %v644, %v643
          %649 = vst [vmem:[#allocation3] sm:$0xff] %v645
          %650 = vst [vmem:[#allocation3 + $0x8] sm:$0xff] %v646
          %651 = vst [vmem:[#allocation3 + $0x10] sm:$0xff] %v647
          %652 = vst [vmem:[#allocation3 + $0x18] sm:$0xff] %v648
        $region96: #{tpu_custom_call.1} parent=55 // pred_fallthru
          _
        %v653 = vld [vmem:[#allocation2] sm:$0xff]
        %v654 = vld [vmem:[#allocation2 + $0x8] sm:$0xff]
        %v655 = vld [vmem:[#allocation2 + $0x10] sm:$0xff]
        %v656 = vld [vmem:[#allocation2 + $0x18] sm:$0xff]
        %v657 = vld [vmem:[#allocation2 + $0x20] sm:$0xff]
        %v658 = vld [vmem:[#allocation2 + $0x28] sm:$0xff]
        %v659 = vld [vmem:[#allocation2 + $0x30] sm:$0xff]
        %v660 = vld [vmem:[#allocation2 + $0x38] sm:$0xff]
        %v661 = vld [vmem:[#allocation3] sm:$0xff]
        %v662 = vld [vmem:[#allocation3 + $0x8] sm:$0xff]
        %v663 = vld [vmem:[#allocation3 + $0x10] sm:$0xff]
        %v664 = vld [vmem:[#allocation3 + $0x18] sm:$0xff]
        %v665 = vld [vmem:[#allocation4] sm:$0xff]
        %v666 = vld [vmem:[#allocation4 + $0x8] sm:$0xff]
        %v667 = vld [vmem:[#allocation4 + $0x10] sm:$0xff]
        %v668 = vld [vmem:[#allocation4 + $0x18] sm:$0xff]
        %vm669 = vcmask 523264
        %v671 = vsel %vm669, %v665, 0
        %v674 = vsel %vm669, %v666, 0
        %v677 = vsel %vm669, %v667, 0
        %v680 = vsel %vm669, %v668, 0
        %682 = vmatprep.subr.bf16.mxu0 0
        %683 = vmatpush1.bf16.msra.mxu0 %v661
        %684 = vmatprep.subr.bf16.mxu0 0
        %685 = vmatpush1.bf16.msra.mxu0 %v662
        %686 = vmatprep.subr.bf16.mxu0 0
        %687 = vmatpush1.bf16.msra.mxu0 %v663
        %688 = vmatprep.subr.bf16.mxu0 0
        %689 = vmatpush1.bf16.msra.mxu0 %v664
        %690 = vmatprep.subr.bf16.mxu0 0
        %691 = vmatpush1.bf16.msra.mxu0 0
        %692 = vmatprep.subr.bf16.mxu0 0
        %693 = vmatpush1.bf16.msra.mxu0 0
        %694 = vmatprep.subr.bf16.mxu0 0
        %695 = vmatpush1.bf16.msra.mxu0 0
        %696 = vmatprep.subr.bf16.mxu0 0
        %697 = vmatpush1.bf16.msra.mxu0 0
        %698 = vmatprep.subr.bf16.mxu0 0
        %699 = vmatpush1.bf16.msra.mxu0 0
        %700 = vmatprep.subr.bf16.mxu0 0
        %701 = vmatpush1.bf16.msra.mxu0 0
        %702 = vmatprep.subr.bf16.mxu0 0
        %703 = vmatpush1.bf16.msra.mxu0 0
        %704 = vmatprep.subr.bf16.mxu0 0
        %705 = vmatpush1.bf16.msra.mxu0 0
        %706 = vmatprep.subr.bf16.mxu0 0
        %707 = vmatpush1.bf16.msra.mxu0 0
        %708 = vmatprep.subr.bf16.mxu0 0
        %709 = vmatpush1.bf16.msra.mxu0 0
        %710 = vmatprep.subr.bf16.mxu0 0
        %711 = vmatpush1.bf16.msra.mxu0 0
        %712 = vmatprep.subr.bf16.mxu0 0
        %713 = vmatpush1.bf16.msra.mxu0 0
        %714 = vmatprep.mubr.bf16.mxu0 0
        %715 = vmatmul.mubr.bf16.gmra.mrb[0].mxu0 %v671
        %v716 = vpop.f32.mrb[0].mxu0
        %v717 = vadd.f32 %v653, %v716
        %v718 = vpop.f32.mrb[0].mxu0
        %v719 = vpop.f32.mrb[0].mxu0
        %v720 = vadd.f32 %v654, %v719
        %v721 = vpop.f32.mrb[0].mxu0
        %722 = vmatprep.mubr.bf16.mxu0 0
        %723 = vmatmul.mubr.bf16.gmra.mrb[0].mxu0 %v674
        %v724 = vpop.f32.mrb[0].mxu0
        %v725 = vadd.f32 %v655, %v724
        %v726 = vpop.f32.mrb[0].mxu0
        %v727 = vpop.f32.mrb[0].mxu0
        %v728 = vadd.f32 %v656, %v727
        %v729 = vpop.f32.mrb[0].mxu0
        %730 = vmatprep.mubr.bf16.mxu0 0
        %731 = vmatmul.mubr.bf16.gmra.mrb[0].mxu0 %v677
        %v732 = vpop.f32.mrb[0].mxu0
        %v733 = vadd.f32 %v657, %v732
        %v734 = vpop.f32.mrb[0].mxu0
        %v735 = vpop.f32.mrb[0].mxu0
        %v736 = vadd.f32 %v658, %v735
        %v737 = vpop.f32.mrb[0].mxu0
        %738 = vmatprep.mubr.bf16.mxu0 0
        %739 = vmatmul.mubr.bf16.gmra.mrb[0].mxu0 %v680
        %v740 = vpop.f32.mrb[0].mxu0
        %v741 = vadd.f32 %v659, %v740
        %v742 = vpop.f32.mrb[0].mxu0
        %v743 = vpop.f32.mrb[0].mxu0
        %v744 = vadd.f32 %v660, %v743
        %v745 = vpop.f32.mrb[0].mxu0
        %746 = vdwg.mxu0
        %v747 = vpack.c.bf16 %v720, %v717
        %v748 = vpack.c.bf16 %v728, %v725
        %v749 = vpack.c.bf16 %v736, %v733
        %v750 = vpack.c.bf16 %v744, %v741
        %v751 = vld [vmem:[%s497] sm:$0xf]
        %v752 = vld [vmem:[%s497 + $0x4] sm:$0xf]
        %v753 = vld [vmem:[%s497 + $0x8] sm:$0xf]
        %v754 = vld [vmem:[%s497 + $0xc] sm:$0xf]
        %v755 = vld [vmem:[%s497 + $0x10] sm:$0xf]
        %v756 = vld [vmem:[%s497 + $0x14] sm:$0xf]
        %v757 = vld [vmem:[%s497 + $0x18] sm:$0xf]
        %v758 = vld [vmem:[%s497 + $0x1c] sm:$0xf]
        %v759 = vld [vmem:[%s497 + $0x20] sm:$0xf]
        %v760 = vld [vmem:[%s497 + $0x24] sm:$0xf]
        %v761 = vld [vmem:[%s497 + $0x28] sm:$0xf]
        %v762 = vld [vmem:[%s497 + $0x2c] sm:$0xf]
        %v763 = vld [vmem:[%s497 + $0x30] sm:$0xf]
        %v764 = vld [vmem:[%s497 + $0x34] sm:$0xf]
        %v765 = vld [vmem:[%s497 + $0x38] sm:$0xf]
        %v766 = vld [vmem:[%s497 + $0x3c] sm:$0xf]
        %v767 = vld [vmem:[%s505] sm:$0x1]
        %v769 = vlaneseq
        %v770 = vshrl.u32 %v769, 7
        %v771 = vsub.s32 0, %v770
        %v772 = vrot.slane %v767, %v771
        %v790 = vunpack.c.l.b16 %v751
        %v791 = vunpack.c.l.b16 %v752
        %v792 = vunpack.c.l.b16 %v753
        %v793 = vunpack.c.l.b16 %v754
        %v794 = vunpack.c.l.b16 %v755
        %v795 = vunpack.c.l.b16 %v756
        %v796 = vunpack.c.l.b16 %v757
        %v797 = vunpack.c.l.b16 %v758
        %v798 = vunpack.c.l.b16 %v759
        %v799 = vunpack.c.l.b16 %v760
        %v800 = vunpack.c.l.b16 %v761
        %v801 = vunpack.c.l.b16 %v762
        %v802 = vunpack.c.l.b16 %v763
        %v803 = vunpack.c.l.b16 %v764
        %v804 = vunpack.c.l.b16 %v765
        %v805 = vunpack.c.l.b16 %v766
        %v806 = vpack.c.b16 %v791, %v790
        %v807 = vpack.c.b16 %v793, %v792
        %v808 = vpack.c.b16 %v795, %v794
        %v809 = vpack.c.b16 %v797, %v796
        %v810 = vpack.c.b16 %v799, %v798
        %v811 = vpack.c.b16 %v801, %v800
        %v812 = vpack.c.b16 %v803, %v802
        %v813 = vpack.c.b16 %v805, %v804
        %822 = vmatprep.subr.bf16.mxu0 0
        %823 = vmatpush1.bf16.msra.mxu0 %v806
        %824 = vmatprep.subr.bf16.mxu0 0
        %825 = vmatpush1.bf16.msra.mxu0 %v807
        %826 = vmatprep.subr.bf16.mxu0 0
        %827 = vmatpush1.bf16.msra.mxu0 %v808
        %828 = vmatprep.subr.bf16.mxu0 0
        %829 = vmatpush1.bf16.msra.mxu0 %v809
        %830 = vmatprep.subr.bf16.mxu0 0
        %831 = vmatpush1.bf16.msra.mxu0 %v810
        %832 = vmatprep.subr.bf16.mxu0 0
        %833 = vmatpush1.bf16.msra.mxu0 %v811
        %834 = vmatprep.subr.bf16.mxu0 0
        %835 = vmatpush1.bf16.msra.mxu0 %v812
        %836 = vmatprep.subr.bf16.mxu0 0
        %837 = vmatpush1.bf16.msra.mxu0 %v813
        %838 = vmatprep.subr.bf16.mxu0 0
        %839 = vmatpush1.bf16.msra.mxu0 0
        %840 = vmatprep.subr.bf16.mxu0 0
        %841 = vmatpush1.bf16.msra.mxu0 0
        %842 = vmatprep.subr.bf16.mxu0 0
        %843 = vmatpush1.bf16.msra.mxu0 0
        %844 = vmatprep.subr.bf16.mxu0 0
        %845 = vmatpush1.bf16.msra.mxu0 0
        %846 = vmatprep.subr.bf16.mxu0 0
        %847 = vmatpush1.bf16.msra.mxu0 0
        %848 = vmatprep.subr.bf16.mxu0 0
        %849 = vmatpush1.bf16.msra.mxu0 0
        %850 = vmatprep.subr.bf16.mxu0 0
        %851 = vmatpush1.bf16.msra.mxu0 0
        %852 = vmatprep.subr.bf16.mxu0 0
        %853 = vmatpush1.bf16.msra.mxu0 0
        %854 = vmatprep.mubr.bf16.mxu0 0
        %855 = vmatmul.mubr.bf16.gmra.mrb[0].mxu0 %v747
        %v856 = vpop.f32.mrb[0].mxu0
        %v857 = vadd.f32 %v772, %v856
        %v858 = vpop.f32.mrb[0].mxu0
        %v859 = vpop.f32.mrb[0].mxu0
        %v860 = vadd.f32 %v772, %v859
        %v861 = vpop.f32.mrb[0].mxu0
        %862 = vmatprep.mubr.bf16.mxu0 0
        %863 = vmatmul.mubr.bf16.gmra.mrb[0].mxu0 %v748
        %v864 = vpop.f32.mrb[0].mxu0
        %v865 = vadd.f32 %v772, %v864
        %v866 = vpop.f32.mrb[0].mxu0
        %v867 = vpop.f32.mrb[0].mxu0
        %v868 = vadd.f32 %v772, %v867
        %v869 = vpop.f32.mrb[0].mxu0
        %870 = vmatprep.mubr.bf16.mxu0 0
        %871 = vmatmul.mubr.bf16.gmra.mrb[0].mxu0 %v749
        %v872 = vpop.f32.mrb[0].mxu0
        %v873 = vadd.f32 %v772, %v872
        %v874 = vpop.f32.mrb[0].mxu0
        %v875 = vpop.f32.mrb[0].mxu0
        %v876 = vadd.f32 %v772, %v875
        %v877 = vpop.f32.mrb[0].mxu0
        %878 = vmatprep.mubr.bf16.mxu0 0
        %879 = vmatmul.mubr.bf16.gmra.mrb[0].mxu0 %v750
        %v880 = vpop.f32.mrb[0].mxu0
        %v881 = vadd.f32 %v772, %v880
        %v882 = vpop.f32.mrb[0].mxu0
        %v883 = vpop.f32.mrb[0].mxu0
        %v884 = vadd.f32 %v772, %v883
        %v885 = vpop.f32.mrb[0].mxu0
        %886 = vdwg.mxu0
        %v887 = vmax.f32 %v857, 0.0
        %v888 = vmax.f32 %v860, 0.0
        %v889 = vmax.f32 %v865, 0.0
        %v890 = vmax.f32 %v868, 0.0
        %v891 = vmax.f32 %v873, 0.0
        %v892 = vmax.f32 %v876, 0.0
        %v893 = vmax.f32 %v881, 0.0
        %v894 = vmax.f32 %v884, 0.0
        %v895 = vpack.c.bf16 %v888, %v887
        %v896 = vpack.c.bf16 %v890, %v889
        %v897 = vpack.c.bf16 %v892, %v891
        %v898 = vpack.c.bf16 %v894, %v893
        %v899 = vld [vmem:[%s514] sm:$0xf]
        %v900 = vld [vmem:[%s514 + $0x4] sm:$0xf]
        %v901 = vld [vmem:[%s514 + $0x8] sm:$0xf]
        %v902 = vld [vmem:[%s514 + $0xc] sm:$0xf]
        %v903 = vld [vmem:[%s514 + $0x10] sm:$0xf]
        %v904 = vld [vmem:[%s514 + $0x14] sm:$0xf]
        %v905 = vld [vmem:[%s514 + $0x18] sm:$0xf]
        %v906 = vld [vmem:[%s514 + $0x1c] sm:$0xf]
        %v907 = vld [vmem:[%s514 + $0x20] sm:$0xf]
        %v908 = vld [vmem:[%s514 + $0x24] sm:$0xf]
        %v909 = vld [vmem:[%s514 + $0x28] sm:$0xf]
        %v910 = vld [vmem:[%s514 + $0x2c] sm:$0xf]
        %v911 = vld [vmem:[%s514 + $0x30] sm:$0xf]
        %v912 = vld [vmem:[%s514 + $0x34] sm:$0xf]
        %v913 = vld [vmem:[%s514 + $0x38] sm:$0xf]
        %v914 = vld [vmem:[%s514 + $0x3c] sm:$0xf]
        %v915 = vld [vmem:[%s522] sm:$0x1]
        %v917 = vlaneseq
        %v918 = vshrl.u32 %v917, 7
        %v919 = vsub.s32 0, %v918
        %v920 = vrot.slane %v915, %v919
        %v938 = vunpack.c.l.b16 %v899
        %v939 = vunpack.c.l.b16 %v900
        %v940 = vunpack.c.l.b16 %v901
        %v941 = vunpack.c.l.b16 %v902
        %v942 = vunpack.c.l.b16 %v903
        %v943 = vunpack.c.l.b16 %v904
        %v944 = vunpack.c.l.b16 %v905
        %v945 = vunpack.c.l.b16 %v906
        %v946 = vunpack.c.l.b16 %v907
        %v947 = vunpack.c.l.b16 %v908
        %v948 = vunpack.c.l.b16 %v909
        %v949 = vunpack.c.l.b16 %v910
        %v950 = vunpack.c.l.b16 %v911
        %v951 = vunpack.c.l.b16 %v912
        %v952 = vunpack.c.l.b16 %v913
        %v953 = vunpack.c.l.b16 %v914
        %v954 = vpack.c.b16 %v939, %v938
        %v955 = vpack.c.b16 %v941, %v940
        %v956 = vpack.c.b16 %v943, %v942
        %v957 = vpack.c.b16 %v945, %v944
        %v958 = vpack.c.b16 %v947, %v946
        %v959 = vpack.c.b16 %v949, %v948
        %v960 = vpack.c.b16 %v951, %v950
        %v961 = vpack.c.b16 %v953, %v952
        %970 = vmatprep.subr.bf16.mxu0 0
        %971 = vmatpush1.bf16.msra.mxu0 %v954
        %972 = vmatprep.subr.bf16.mxu0 0
        %973 = vmatpush1.bf16.msra.mxu0 %v955
        %974 = vmatprep.subr.bf16.mxu0 0
        %975 = vmatpush1.bf16.msra.mxu0 %v956
        %976 = vmatprep.subr.bf16.mxu0 0
        %977 = vmatpush1.bf16.msra.mxu0 %v957
        %978 = vmatprep.subr.bf16.mxu0 0
        %979 = vmatpush1.bf16.msra.mxu0 %v958
        %980 = vmatprep.subr.bf16.mxu0 0
        %981 = vmatpush1.bf16.msra.mxu0 %v959
        %982 = vmatprep.subr.bf16.mxu0 0
        %983 = vmatpush1.bf16.msra.mxu0 %v960
        %984 = vmatprep.subr.bf16.mxu0 0
        %985 = vmatpush1.bf16.msra.mxu0 %v961
        %986 = vmatprep.subr.bf16.mxu0 0
        %987 = vmatpush1.bf16.msra.mxu0 0
        %988 = vmatprep.subr.bf16.mxu0 0
        %989 = vmatpush1.bf16.msra.mxu0 0
        %990 = vmatprep.subr.bf16.mxu0 0
        %991 = vmatpush1.bf16.msra.mxu0 0
        %992 = vmatprep.subr.bf16.mxu0 0
        %993 = vmatpush1.bf16.msra.mxu0 0
        %994 = vmatprep.subr.bf16.mxu0 0
        %995 = vmatpush1.bf16.msra.mxu0 0
        %996 = vmatprep.subr.bf16.mxu0 0
        %997 = vmatpush1.bf16.msra.mxu0 0
        %998 = vmatprep.subr.bf16.mxu0 0
        %999 = vmatpush1.bf16.msra.mxu0 0
        %1000 = vmatprep.subr.bf16.mxu0 0
        %1001 = vmatpush1.bf16.msra.mxu0 0
        %1002 = vmatprep.mubr.bf16.mxu0 0
        %1003 = vmatmul.mubr.bf16.gmra.mrb[0].mxu0 %v895
        %v1004 = vpop.f32.mrb[0].mxu0
        %v1005 = vadd.f32 %v920, %v1004
        %v1006 = vpop.f32.mrb[0].mxu0
        %v1007 = vpop.f32.mrb[0].mxu0
        %v1008 = vadd.f32 %v920, %v1007
        %v1009 = vpop.f32.mrb[0].mxu0
        %1010 = vmatprep.mubr.bf16.mxu0 0
        %1011 = vmatmul.mubr.bf16.gmra.mrb[0].mxu0 %v896
        %v1012 = vpop.f32.mrb[0].mxu0
        %v1013 = vadd.f32 %v920, %v1012
        %v1014 = vpop.f32.mrb[0].mxu0
        %v1015 = vpop.f32.mrb[0].mxu0
        %v1016 = vadd.f32 %v920, %v1015
        %v1017 = vpop.f32.mrb[0].mxu0
        %1018 = vmatprep.mubr.bf16.mxu0 0
        %1019 = vmatmul.mubr.bf16.gmra.mrb[0].mxu0 %v897
        %v1020 = vpop.f32.mrb[0].mxu0
        %v1021 = vadd.f32 %v920, %v1020
        %v1022 = vpop.f32.mrb[0].mxu0
        %v1023 = vpop.f32.mrb[0].mxu0
        %v1024 = vadd.f32 %v920, %v1023
        %v1025 = vpop.f32.mrb[0].mxu0
        %1026 = vmatprep.mubr.bf16.mxu0 0
        %1027 = vmatmul.mubr.bf16.gmra.mrb[0].mxu0 %v898
        %v1028 = vpop.f32.mrb[0].mxu0
        %v1029 = vadd.f32 %v920, %v1028
        %v1030 = vpop.f32.mrb[0].mxu0
        %v1031 = vpop.f32.mrb[0].mxu0
        %v1032 = vadd.f32 %v920, %v1031
        %v1033 = vpop.f32.mrb[0].mxu0
        %1034 = vdwg.mxu0
        %v1035 = vmax.f32 %v1005, 0.0
        %v1036 = vmax.f32 %v1008, 0.0
        %v1037 = vmax.f32 %v1013, 0.0
        %v1038 = vmax.f32 %v1016, 0.0
        %v1039 = vmax.f32 %v1021, 0.0
        %v1040 = vmax.f32 %v1024, 0.0
        %v1041 = vmax.f32 %v1029, 0.0
        %v1042 = vmax.f32 %v1032, 0.0
        %v1043 = vld [vmem:[#allocation11] sm:$0xff]
        %v1044 = vld [vmem:[#allocation11 + $0x8] sm:$0xff]
        %v1045 = vld [vmem:[#allocation11 + $0x10] sm:$0xff]
        %v1046 = vld [vmem:[#allocation11 + $0x18] sm:$0xff]
        %v1047 = vld [vmem:[#allocation11 + $0x20] sm:$0xff]
        %v1048 = vld [vmem:[#allocation11 + $0x28] sm:$0xff]
        %v1049 = vld [vmem:[#allocation11 + $0x30] sm:$0xff]
        %v1050 = vld [vmem:[#allocation11 + $0x38] sm:$0xff]
        %1052 = vset.pattern.permute.xlu0 0
        %1053 = vperm.xlu0 %1052, %v1043
        %v1054 = vpop.permute.xlu0 %1053
        %1057 = vset.pattern.permute.xlu0 0
        %1058 = vperm.xlu0 %1057, %v1044
        %v1059 = vpop.permute.xlu0 %1058
        %1062 = vset.pattern.permute.xlu0 0
        %1063 = vperm.xlu0 %1062, %v1045
        %v1064 = vpop.permute.xlu0 %1063
        %1067 = vset.pattern.permute.xlu0 0
        %1068 = vperm.xlu0 %1067, %v1046
        %v1069 = vpop.permute.xlu0 %1068
        %1072 = vset.pattern.permute.xlu0 0
        %1073 = vperm.xlu0 %1072, %v1047
        %v1074 = vpop.permute.xlu0 %1073
        %1077 = vset.pattern.permute.xlu0 0
        %1078 = vperm.xlu0 %1077, %v1048
        %v1079 = vpop.permute.xlu0 %1078
        %1082 = vset.pattern.permute.xlu0 0
        %1083 = vperm.xlu0 %1082, %v1049
        %v1084 = vpop.permute.xlu0 %1083
        %1087 = vset.pattern.permute.xlu0 0
        %1088 = vperm.xlu0 %1087, %v1050
        %v1089 = vpop.permute.xlu0 %1088
        %v1091 = vmul.f32 %v1035, %v1054
        %v1092 = vmul.f32 %v1036, %v1059
        %v1093 = vmul.f32 %v1037, %v1064
        %v1094 = vmul.f32 %v1038, %v1069
        %v1095 = vmul.f32 %v1039, %v1074
        %v1096 = vmul.f32 %v1040, %v1079
        %v1097 = vmul.f32 %v1041, %v1084
        %v1098 = vmul.f32 %v1042, %v1089
        %v1099 = vadd.f32 %v1091, %v1092
        %v1100 = vadd.f32 %v1099, %v1093
        %v1101 = vadd.f32 %v1100, %v1094
        %v1102 = vadd.f32 %v1101, %v1095
        %v1103 = vadd.f32 %v1102, %v1096
        %v1104 = vadd.f32 %v1103, %v1097
        %v1105 = vadd.f32 %v1104, %v1098
        %v1106 = vrot.slane %v1105, 4
        %v1107 = vadd.f32 %v1105, %v1106
        %v1108 = vrot.slane %v1107, 2
        %v1109 = vadd.f32 %v1107, %v1108
        %v1110 = vrot.slane %v1109, 1
        %v1111 = vadd.f32 %v1109, %v1110
        %v1112 = vmul.f32 %v1111, 0.015625
        %v1113 = vmul.f32 %v1091, %v1035
        %v1114 = vmul.f32 %v1092, %v1036
        %v1115 = vmul.f32 %v1093, %v1037
        %v1116 = vmul.f32 %v1094, %v1038
        %v1117 = vmul.f32 %v1095, %v1039
        %v1118 = vmul.f32 %v1096, %v1040
        %v1119 = vmul.f32 %v1097, %v1041
        %v1120 = vmul.f32 %v1098, %v1042
        %v1121 = vadd.f32 %v1113, %v1114
        %v1122 = vadd.f32 %v1121, %v1115
        %v1123 = vadd.f32 %v1122, %v1116
        %v1124 = vadd.f32 %v1123, %v1117
        %v1125 = vadd.f32 %v1124, %v1118
        %v1126 = vadd.f32 %v1125, %v1119
        %v1127 = vadd.f32 %v1126, %v1120
        %v1128 = vrot.slane %v1127, 4
        %v1129 = vadd.f32 %v1127, %v1128
        %v1130 = vrot.slane %v1129, 2
        %v1131 = vadd.f32 %v1129, %v1130
        %v1132 = vrot.slane %v1131, 1
        %v1133 = vadd.f32 %v1131, %v1132
        %v1134 = vmul.f32 %v1133, 0.015625
        %v1135 = vmul.f32 %v1112, %v1112
        %v1136 = vsub.f32 %v1134, %v1135
        %v1137 = vmax.f32 %v1136, 0.0
        %v1138 = vld [vmem:[%s530] sm:$0x1]
        %v1139 = vadd.f32 %v1137, 1e-05
        %v1140 = vrsqrt.pop %v1139
        %v1141 = vmul.f32 %v1138, %v1140
        %v1142 = vld [vmem:[%s538] sm:$0x1]
        %v1143 = vmul.f32 %v1112, %v1141
        %v1144 = vsub.f32 %v1142, %v1143
        %v1146 = vlaneseq
        %v1147 = vshrl.u32 %v1146, 7
        %v1148 = vsub.s32 0, %v1147
        %v1149 = vrot.slane %v1141, %v1148
        %v1151 = vmul.f32 %v1035, %v1149
        %v1152 = vmul.f32 %v1036, %v1149
        %v1153 = vmul.f32 %v1037, %v1149
        %v1154 = vmul.f32 %v1038, %v1149
        %v1155 = vmul.f32 %v1039, %v1149
        %v1156 = vmul.f32 %v1040, %v1149
        %v1157 = vmul.f32 %v1041, %v1149
        %v1158 = vmul.f32 %v1042, %v1149
        %v1160 = vlaneseq
        %v1161 = vshrl.u32 %v1160, 7
        %v1162 = vsub.s32 0, %v1161
        %v1163 = vrot.slane %v1144, %v1162
        %v1165 = vadd.f32 %v1151, %v1163
        %v1166 = vadd.f32 %v1152, %v1163
        %v1167 = vadd.f32 %v1153, %v1163
        %v1168 = vadd.f32 %v1154, %v1163
        %v1169 = vadd.f32 %v1155, %v1163
        %v1170 = vadd.f32 %v1156, %v1163
        %v1171 = vadd.f32 %v1157, %v1163
        %v1172 = vadd.f32 %v1158, %v1163
        %v1173 = vmul.f32 %v1165, %v1054
        %v1174 = vmul.f32 %v1166, %v1059
        %v1175 = vmul.f32 %v1167, %v1064
        %v1176 = vmul.f32 %v1168, %v1069
        %v1177 = vmul.f32 %v1169, %v1074
        %v1178 = vmul.f32 %v1170, %v1079
        %v1179 = vmul.f32 %v1171, %v1084
        %v1180 = vmul.f32 %v1172, %v1089
        %v1181 = vpack.c.bf16 %v1174, %v1173
        %v1182 = vpack.c.bf16 %v1176, %v1175
        %v1183 = vpack.c.bf16 %v1178, %v1177
        %v1184 = vpack.c.bf16 %v1180, %v1179
        %1185 = vst [vmem:[#allocation2] sm:$0xff] %v1173
        %1186 = vst [vmem:[#allocation2 + $0x8] sm:$0xff] %v1174
        %1187 = vst [vmem:[#allocation2 + $0x10] sm:$0xff] %v1175
        %1188 = vst [vmem:[#allocation2 + $0x18] sm:$0xff] %v1176
        %1189 = vst [vmem:[#allocation2 + $0x20] sm:$0xff] %v1177
        %1190 = vst [vmem:[#allocation2 + $0x28] sm:$0xff] %v1178
        %1191 = vst [vmem:[#allocation2 + $0x30] sm:$0xff] %v1179
        %1192 = vst [vmem:[#allocation2 + $0x38] sm:$0xff] %v1180
        %1193 = vst [vmem:[#allocation3] sm:$0xff] %v1181
        %1194 = vst [vmem:[#allocation3 + $0x8] sm:$0xff] %v1182
        %1195 = vst [vmem:[#allocation3 + $0x10] sm:$0xff] %v1183
        %1196 = vst [vmem:[#allocation3 + $0x18] sm:$0xff] %v1184
        %v1201 = vunpack.c.l.b16 %v1181
        %v1202 = vunpack.c.h.b16 %v1181
        %v1203 = vunpack.c.l.b16 %v1182
        %v1204 = vunpack.c.h.b16 %v1182
        %v1205 = vunpack.c.l.b16 %v1183
        %v1206 = vunpack.c.h.b16 %v1183
        %v1207 = vunpack.c.l.b16 %v1184
        %v1208 = vunpack.c.h.b16 %v1184
        %v1209 = vpack.c.b16 %v1201, %v1201
        %v1210 = vpack.c.b16 %v1202, %v1202
        %v1211 = vpack.c.b16 %v1203, %v1203
        %v1212 = vpack.c.b16 %v1204, %v1204
        %v1213 = vpack.c.b16 %v1205, %v1205
        %v1214 = vpack.c.b16 %v1206, %v1206
        %v1215 = vpack.c.b16 %v1207, %v1207
        %v1216 = vpack.c.b16 %v1208, %v1208
        %1225 = vst [vmem:[%s593] sm:$0xf] %v1209
        %1226 = vst [vmem:[%s593 + $0x4] sm:$0xf] %v1210
        %1227 = vst [vmem:[%s593 + $0x8] sm:$0xf] %v1211
        %1228 = vst [vmem:[%s593 + $0xc] sm:$0xf] %v1212
        %1229 = vst [vmem:[%s593 + $0x10] sm:$0xf] %v1213
        %1230 = vst [vmem:[%s593 + $0x14] sm:$0xf] %v1214
        %1231 = vst [vmem:[%s593 + $0x18] sm:$0xf] %v1215
        %1232 = vst [vmem:[%s593 + $0x1c] sm:$0xf] %v1216
        %v1233 = vld [vmem:[#allocation9] sm:$0xf]
        %v1234 = vld [vmem:[#allocation9 + $0x4] sm:$0xf]
        %v1237 = vunpack.c.l.b16 %v1233
        %v1238 = vunpack.c.l.b16 %v1234
        %v1239 = vpack.c.b16 %v1238, %v1237
        %v1241 = vsel %vm669, %v1239, 0
        %1243 = vmatprep.subr.bf16.mxu0 0
        %1244 = vmatpush1.bf16.msra.mxu0 %v1181
        %1245 = vmatprep.subr.bf16.mxu0 0
        %1246 = vmatpush1.bf16.msra.mxu0 %v1182
        %1247 = vmatprep.subr.bf16.mxu0 0
        %1248 = vmatpush1.bf16.msra.mxu0 %v1183
        %1249 = vmatprep.subr.bf16.mxu0 0
        %1250 = vmatpush1.bf16.msra.mxu0 %v1184
        %1251 = vmatprep.subr.bf16.mxu0 0
        %1252 = vmatpush1.bf16.msra.mxu0 0
        %1253 = vmatprep.subr.bf16.mxu0 0
        %1254 = vmatpush1.bf16.msra.mxu0 0
        %1255 = vmatprep.subr.bf16.mxu0 0
        %1256 = vmatpush1.bf16.msra.mxu0 0
        %1257 = vmatprep.subr.bf16.mxu0 0
        %1258 = vmatpush1.bf16.msra.mxu0 0
        %1259 = vmatprep.subr.bf16.mxu0 0
        %1260 = vmatpush1.bf16.msra.mxu0 0
        %1261 = vmatprep.subr.bf16.mxu0 0
        %1262 = vmatpush1.bf16.msra.mxu0 0
        %1263 = vmatprep.subr.bf16.mxu0 0
        %1264 = vmatpush1.bf16.msra.mxu0 0
        %1265 = vmatprep.subr.bf16.mxu0 0
        %1266 = vmatpush1.bf16.msra.mxu0 0
        %1267 = vmatprep.subr.bf16.mxu0 0
        %1268 = vmatpush1.bf16.msra.mxu0 0
        %1269 = vmatprep.subr.bf16.mxu0 0
        %1270 = vmatpush1.bf16.msra.mxu0 0
        %1271 = vmatprep.subr.bf16.mxu0 0
        %1272 = vmatpush1.bf16.msra.mxu0 0
        %1273 = vmatprep.subr.bf16.mxu0 0
        %1274 = vmatpush1.bf16.msra.mxu0 0
        %1275 = vmatprep.mubr.bf16.mxu0 0
        %1276 = vmatmul.mubr.bf16.gmra.mrb[0].mxu0 %v1241
        %v1277 = vpop.f32.mrb[0].mxu0
        %v1278 = vadd.f32 0.0, %v1277
        %v1279 = vpop.f32.mrb[0].mxu0
        %v1280 = vpop.f32.mrb[0].mxu0
        %v1281 = vadd.f32 0.0, %v1280
        %v1282 = vpop.f32.mrb[0].mxu0
        %1283 = vdwg.mxu0
        %v1284 = vpack.c.bf16 %v1281, %v1278
        %v1286 = vunpack.c.l.b16 %v1284
        %v1287 = vunpack.c.h.b16 %v1284
        %v1288 = vpack.c.b16 %v1286, %v1286
        %v1289 = vpack.c.b16 %v1287, %v1287
        %1292 = vst [vmem:[%s600] sm:$0xf] %v1288
        %1293 = vst [vmem:[%s600 + $0x4] sm:$0xf] %v1289
        %s1294 = sand.u32 %s267, 1
        %s1295 = scalar_lea.sflag [#allocation8], %s1294
        %s1296 = sand.u32 %s267, 1
        %s1297 = smul.addr %s1296, 32
        %s1298 = scalar_lea.vmem [#allocation21], %s1297
        %s1299 = sand.u32 %s293, 1
        %s1300 = scalar_lea.sflag [#allocation23], %s1299
        %s1301 = sand.u32 %s293, 1
        %s1302 = smul.addr %s1301, 8
        %s1303 = scalar_lea.vmem [#allocation22], %s1302
        // Predicated region
        $region101: #{tpu_custom_call.1} parent=55 // pred_check
          %p1304 = pneg %p277
        $region102: #{tpu_custom_call.1} parent=55 // pred_check_branch
          %1306 = sbr.rel (%p1304) target = $region104
        $region103: #{tpu_custom_call.1} parent=55 // pred_region
          %s1308 = ssub.s32 512, 512
          %1309 = vsyncadd %s1295, %s1308
          %s1310 = smul.addr %s40, 64
          %s1311 = scalar_lea.hbm %s10, %s1310
          %s1312 = sshll.u32 %s1298, 4
          %s1313 = int_to_ptr.vmem [resolvable:$true] %s1312
          %1318 = dma.vmem_to_hbm [thread:$0]  %s1313, 512, %s1311, %s1295, 64, 128, 4
        $region104: #{tpu_custom_call.1} parent=55 // pred_fallthru
          _
        // Predicated region
        $region105: #{tpu_custom_call.1} parent=55 // pred_check
          %p1319 = pneg %p303
        $region106: #{tpu_custom_call.1} parent=55 // pred_check_branch
          %1321 = sbr.rel (%p1319) target = $region108
        $region107: #{tpu_custom_call.1} parent=55 // pred_region
          %s1323 = ssub.s32 128, 128
          %1324 = vsyncadd %s1300, %s1323
          %s1325 = smul.addr %s40, 64
          %s1326 = scalar_lea.hbm %s11, %s1325
          %s1327 = sshll.u32 %s1303, 4
          %s1328 = int_to_ptr.vmem [resolvable:$true] %s1327
          %1333 = dma.vmem_to_hbm [thread:$0]  %s1328, 128, %s1326, %s1300, 64, 128, 4
        $region108: #{tpu_custom_call.1} parent=55 // pred_fallthru
          _
      $region56: #{tpu_custom_call.1} parent=5 // pred_fallthru
        _
      %p1334 = scmp.le.s32.totalorder 2, %s35
      // Predicated region
      $region109: #{tpu_custom_call.1} parent=5 // pred_check
        %p1335 = pneg %p1334
      $region110: #{tpu_custom_call.1} parent=5 // pred_check_branch
        %1337 = sbr.rel (%p1335) target = $region112
      $region111: #{tpu_custom_call.1} parent=5 // pred_region
        %s1338 = ssub.s32 %s35, 2
        // Predicated region
        $region113: #{tpu_custom_call.1} parent=111 // pred_check
          %p1339 = pneg %p283
        $region114: #{tpu_custom_call.1} parent=111 // pred_check_branch
          %1341 = sbr.rel (%p1339) target = $region116
        $region115: #{tpu_custom_call.1} parent=111 // pred_region
          %s1342 = sand.u32 %s268, 1
          %s1343 = scalar_lea.sflag [#allocation8], %s1342
          %s1344 = sand.u32 %s268, 1
          %s1345 = smul.addr %s1344, 32
          %s1346 = scalar_lea.vmem [#allocation21], %s1345
          %1347 = dma.done %s1343, 512
        $region116: #{tpu_custom_call.1} parent=111 // pred_fallthru
          _
        // Predicated region
        $region117: #{tpu_custom_call.1} parent=111 // pred_check
          %p1348 = pneg %p309
        $region118: #{tpu_custom_call.1} parent=111 // pred_check_branch
          %1350 = sbr.rel (%p1348) target = $region120
        $region119: #{tpu_custom_call.1} parent=111 // pred_region
          %s1351 = sand.u32 %s294, 1
          %s1352 = scalar_lea.sflag [#allocation23], %s1351
          %s1353 = sand.u32 %s294, 1
          %s1354 = smul.addr %s1353, 8
          %s1355 = scalar_lea.vmem [#allocation22], %s1354
          %1356 = dma.done %s1352, 128
        $region120: #{tpu_custom_call.1} parent=111 // pred_fallthru
          _
      $region112: #{tpu_custom_call.1} parent=5 // pred_fallthru
        _
    $region6: #{tpu_custom_call.1} parent=1 // loop_footer
      %s39 = sadd.s32 1, %s35
    $region7: #{tpu_custom_call.1} parent=1 // loop_footer_branch
      %34 = sbr.rel target = $region3
    $region8: #{tpu_custom_call.1} parent=1 // loop_exit
      _
    %1357 = vsyncpa [#allocation7], 1
    %s1358 = scalar_lea.sflag [#allocation7], 1
    %1359 = vsyncpa %s1358, 1
    %1360 = vsyncpa [#allocation10], 1
    %1361 = vsyncpa [#allocation13], 1
    %s1362 = scalar_lea.sflag [#allocation13], 1
    %1363 = vsyncpa %s1362, 1
    %1364 = vsyncpa [#allocation16], 1
    %s1365 = scalar_lea.sflag [#allocation16], 1
    %1366 = vsyncpa %s1365, 1
    %1367 = vsyncpa [#allocation19], 1
    %s1368 = scalar_lea.sflag [#allocation19], 1
    %1369 = vsyncpa %s1368, 1
    %1370 = vsyncpa [#allocation8], 1
    %s1371 = scalar_lea.sflag [#allocation8], 1
    %1372 = vsyncpa %s1371, 1
    %1373 = vsyncpa [#allocation23], 1
    %s1374 = scalar_lea.sflag [#allocation23], 1
    %1375 = vsyncpa %s1374, 1
  %1376 = vsyncmov [#allocation5]
  %s1377 = vpop.sfrf %1376
  %p1378 = scmp.eq.s32.totalorder %s1377, 0
  %p1379 = pneg %p1378
  %1381 = shalt.err (%p1379)

</llo_original>
